<compile_context>
chip_gen: v5e
topology: v5e:2x2
jax: 0.10.0
libtpu: 0.0.40
codegen_flags: <defaults>
</compile_context>

<pallas_src>
import functools

import jax
import jax.numpy as jnp
from jax.experimental import pallas as pl
from jax.experimental.pallas import tpu as pltpu


def _relu(v):
    return jnp.maximum(v, 0.0)


def _sigmoid(z):
    return 1.0 / (1.0 + jnp.exp(-z))


def deepsdf_kernel(x_ref,
                   w1_ref, w2_ref, w3_ref, w4_ref,
                   w5m_ref, w5t_ref, w6_ref, w7_ref, w8t_ref,
                   b_ref, b8_ref,
                   out_ref):
    f32, bf16 = jnp.float32, jnp.bfloat16

    x = x_ref[...]                                    # (TB, d_in) bf16
    d_in = x.shape[1]

    b1 = b_ref[0:1, :]; b2 = b_ref[1:2, :]; b3 = b_ref[2:3, :]; b4 = b_ref[3:4, :]
    b5 = b_ref[4:5, :]; b6 = b_ref[5:6, :]; b7 = b_ref[6:7, :]

    # ----- block1: 4x Linear -> ReLU (Dropout == identity in eval mode) -----
    h = _relu(jnp.dot(x, w1_ref[...], preferred_element_type=f32) + b1)
    h = _relu(jnp.dot(h.astype(bf16), w2_ref[...], preferred_element_type=f32) + b2)
    h = _relu(jnp.dot(h.astype(bf16), w3_ref[...], preferred_element_type=f32) + b3)
    mid = _relu(jnp.dot(h.astype(bf16), w4_ref[...], preferred_element_type=f32) + b4)

    # ----- concat([mid, x[:, -3:]]) folded: cat @ W5 == mid @ W5[:n] + x_tail @ W5[n:]
    # The K=3 tail matmul is done as 3 VPU broadcast FMAs (no extra MXU push).
    xt = x[:, d_in - 3:d_in].astype(f32)              # (TB, 3) f32
    w5t = w5t_ref[...]                                # (3, n)  f32
    tail = (xt[:, 0:1] * w5t[0:1, :]
            + xt[:, 1:2] * w5t[1:2, :]
            + xt[:, 2:3] * w5t[2:3, :])               # (TB, n) f32

    g = _relu(jnp.dot(mid.astype(bf16), w5m_ref[...], preferred_element_type=f32)
              + tail + b5)
    g = _relu(jnp.dot(g.astype(bf16), w6_ref[...], preferred_element_type=f32) + b6)
    g = _relu(jnp.dot(g.astype(bf16), w7_ref[...], preferred_element_type=f32) + b7)

    # ----- final Linear(n, 1) -> Sigmoid, scaled by 3; computed transposed so
    # the per-tile store is lane-dense (1, TB) instead of a masked (TB, 1). -----
    logits = jax.lax.dot_general(
        w8t_ref[...], g.astype(bf16),                 # (8, n) @ (TB, n)^T
        dimension_numbers=(((1,), (1,)), ((), ())),
        preferred_element_type=f32)                   # (8, TB); only row 0 is real
    z = logits[0:1, :] + b8_ref[...]                  # (1, TB)
    out_ref[0] = 3.0 * _sigmoid(z)


def _round_up(v, m):
    return (v + m - 1) // m * m


def init_params(key, code_length, n_features):
    """Deterministic synthetic parameters; weights stored (in, out), biases (1, out)."""
    n_in1 = code_length + 3
    n_in2 = n_features + 3
    dims = [
        (n_in1, n_features), (n_features, n_features),       # block1 layers 1-2
        (n_features, n_features), (n_features, n_features),  # block1 layers 3-4
        (n_in2, n_features), (n_features, n_features),       # block2 layers 1-2
        (n_features, n_features), (n_features, 1),           # block2 layers 3-4
    ]
    params = []
    for (din, dout) in dims:
        key, kw, kb = jax.random.split(key, 3)
        w = jax.random.normal(kw, (din, dout), jnp.float32) * 0.1
        b = jax.random.normal(kb, (1, dout), jnp.float32) * 0.1
        params.append((w, b))
    return params


@functools.partial(jax.jit, static_argnames=("block_rows",))
def deepsdf_forward(x, params, *, block_rows=4096):
    B, d_in = x.shape
    (w1, b1), (w2, b2), (w3, b3), (w4, b4), (w5, b5), (w6, b6), (w7, b7), (w8, b8) = params
    n_features = w2.shape[0]
    bf16 = jnp.bfloat16

    # --- batch tiling: tiles are multiples of 128 rows (lane-dense output,
    #     sublane alignment for bf16 inputs); remainder rows are zero-padded. ---
    tb = _round_up(min(block_rows, _round_up(B, 128)), 128)
    b_pad = _round_up(B, tb)
    num_tiles = b_pad // tb

    # glue: pad remainder, stream points in bf16 (halves the dominant HBM bytes)
    x_pad = jnp.pad(x, ((0, b_pad - B), (0, 0))).astype(bf16)

    # glue: fold concat into a split first layer of block2
    w5m = w5[:n_features, :]
    w5t = w5[n_features:, :]                                       # (3, n), f32 (VPU path)
    # glue: transposed final weight padded to 8 rows so the MXU LHS is (8, n)
    w8t = jnp.zeros((8, n_features), jnp.float32).at[0, :].set(w8[:, 0]).astype(bf16)
    bias_pack = jnp.concatenate([b1, b2, b3, b4, b5, b6, b7], axis=0)   # (7, n) f32
    b8s = b8.reshape(1, 1)

    operands = (x_pad,
                w1.astype(bf16), w2.astype(bf16), w3.astype(bf16), w4.astype(bf16),
                w5m.astype(bf16), w5t, w6.astype(bf16), w7.astype(bf16), w8t,
                bias_pack, b8s)

    # Weights/biases: full-array blocks + constant index_map -> DMA'd once,
    # resident in VMEM across the whole batch grid.
    resident = lambda a: pl.BlockSpec(a.shape, lambda i: (0, 0))
    in_specs = ([pl.BlockSpec((tb, d_in), lambda i: (i, 0))]
                + [resident(a) for a in operands[1:]])

    out = pl.pallas_call(
        deepsdf_kernel,
        out_shape=jax.ShapeDtypeStruct((num_tiles, 1, tb), jnp.float32),
        grid=(num_tiles,),
        in_specs=in_specs,
        out_specs=pl.BlockSpec((1, 1, tb), lambda i: (i, 0, 0)),
        compiler_params=pltpu.CompilerParams(
            dimension_semantics=("parallel",),          # v7x: both TCs share the grid
            vmem_limit_bytes=32 * 1024 * 1024),
    )(*operands)
    return out.reshape(b_pad)[:B]                       # .squeeze() -> (B,)


def deepsdf_reference_f32(x, params):
    """Pure-JAX f32 reference matching the PyTorch forward (eval mode)."""
    hp = jax.lax.Precision.HIGHEST
    (w1, b1), (w2, b2), (w3, b3), (w4, b4), (w5, b5), (w6, b6), (w7, b7), (w8, b8) = params
    h = _relu(jnp.dot(x, w1, precision=hp) + b1)
    h = _relu(jnp.dot(h, w2, precision=hp) + b2)
    h = _relu(jnp.dot(h, w3, precision=hp) + b3)
    mid = _relu(jnp.dot(h, w4, precision=hp) + b4)
    cat = jnp.concatenate([mid, x[:, -3:]], axis=1)
    g = _relu(jnp.dot(cat, w5, precision=hp) + b5)
    g = _relu(jnp.dot(g, w6, precision=hp) + b6)
    g = _relu(jnp.dot(g, w7, precision=hp) + b7)
    return 3.0 * _sigmoid(jnp.dot(g, w8, precision=hp) + b8)[:, 0]


def deepsdf_reference_mixed(x, params):
    """Reference applying the same bf16 rounding the kernel feeds the MXU."""
    hp = jax.lax.Precision.HIGHEST
    q = lambda a: a.astype(jnp.bfloat16).astype(jnp.float32)
    (w1, b1), (w2, b2), (w3, b3), (w4, b4), (w5, b5), (w6, b6), (w7, b7), (w8, b8) = params
    n = w2.shape[0]
    xq = q(x)
    h = _relu(jnp.dot(xq, q(w1), precision=hp) + b1)
    h = _relu(jnp.dot(q(h), q(w2), precision=hp) + b2)
    h = _relu(jnp.dot(q(h), q(w3), precision=hp) + b3)
    mid = _relu(jnp.dot(q(h), q(w4), precision=hp) + b4)
    tail = jnp.dot(xq[:, -3:], w5[n:, :], precision=hp)
    g = _relu(jnp.dot(q(mid), q(w5[:n, :]), precision=hp) + tail + b5)
    g = _relu(jnp.dot(q(g), q(w6), precision=hp) + b6)
    g = _relu(jnp.dot(q(g), q(w7), precision=hp) + b7)
    return 3.0 * _sigmoid(jnp.dot(q(g), q(w8), precision=hp) + b8)[:, 0]


if __name__ == "__main__":
    code_length = 13          # -> input dim = code_length + 3 = 16
    n_features = 32
    batch = 200               # not a multiple of the tile -> exercises padding + 2 tiles

    key = jax.random.PRNGKey(0)
    kx, kp = jax.random.split(key)
    x = jax.random.normal(kx, (batch, code_length + 3), jnp.float32)
    params = init_params(kp, code_length, n_features)

    out = deepsdf_forward(x, params, block_rows=128)
    out = jax.block_until_ready(out)

    assert out.shape == (batch,), out.shape
    # Tight check vs. a reference that applies identical bf16 operand rounding.
    assert jnp.allclose(out, deepsdf_reference_mixed(x, params), atol=5e-4, rtol=5e-4)
    # Loose check vs. full-f32 PyTorch-equivalent math (only bf16 quantization differs).
    assert jnp.allclose(out, deepsdf_reference_f32(x, params), atol=5e-2, rtol=5e-2)

    print("KERNEL_OK")
</pallas_src>

<mosaic_0001>
module attributes {stable_mosaic.version = 11 : i64} {
  func.func @deepsdf_kernel(%arg0: i32, %arg1: memref<128x16xbf16, #tpu.memory_space<vmem>>, %arg2: memref<16x32xbf16, #tpu.memory_space<vmem>>, %arg3: memref<32x32xbf16, #tpu.memory_space<vmem>>, %arg4: memref<32x32xbf16, #tpu.memory_space<vmem>>, %arg5: memref<32x32xbf16, #tpu.memory_space<vmem>>, %arg6: memref<32x32xbf16, #tpu.memory_space<vmem>>, %arg7: memref<3x32xf32, #tpu.memory_space<vmem>>, %arg8: memref<32x32xbf16, #tpu.memory_space<vmem>>, %arg9: memref<32x32xbf16, #tpu.memory_space<vmem>>, %arg10: memref<8x32xbf16, #tpu.memory_space<vmem>>, %arg11: memref<7x32xf32, #tpu.memory_space<vmem>>, %arg12: memref<1x1xf32, #tpu.memory_space<vmem>>, %arg13: memref<1x1x128xf32, #tpu.memory_space<vmem>>) attributes {dimension_semantics = [#tpu.dimension_semantics<parallel>], iteration_bounds = array<i64: 2>, scalar_prefetch = 0 : i64, scratch_operands = 0 : i64, tpu.core_type = #tpu.core_type<tc>, window_params = [{transform_indices = @transform_0, window_bounds = array<i64: 128, 16>}, {pipeline_mode = #tpu.pipeline_mode<synchronous>, transform_indices = @transform_1, window_bounds = array<i64: 16, 32>}, {pipeline_mode = #tpu.pipeline_mode<synchronous>, transform_indices = @transform_2, window_bounds = array<i64: 32, 32>}, {pipeline_mode = #tpu.pipeline_mode<synchronous>, transform_indices = @transform_3, window_bounds = array<i64: 32, 32>}, {pipeline_mode = #tpu.pipeline_mode<synchronous>, transform_indices = @transform_4, window_bounds = array<i64: 32, 32>}, {pipeline_mode = #tpu.pipeline_mode<synchronous>, transform_indices = @transform_5, window_bounds = array<i64: 32, 32>}, {pipeline_mode = #tpu.pipeline_mode<synchronous>, transform_indices = @transform_6, window_bounds = array<i64: 3, 32>}, {pipeline_mode = #tpu.pipeline_mode<synchronous>, transform_indices = @transform_7, window_bounds = array<i64: 32, 32>}, {pipeline_mode = #tpu.pipeline_mode<synchronous>, transform_indices = @transform_8, window_bounds = array<i64: 32, 32>}, {pipeline_mode = #tpu.pipeline_mode<synchronous>, transform_indices = @transform_9, window_bounds = array<i64: 8, 32>}, {pipeline_mode = #tpu.pipeline_mode<synchronous>, transform_indices = @transform_10, window_bounds = array<i64: 7, 32>}, {pipeline_mode = #tpu.pipeline_mode<synchronous>, transform_indices = @transform_11, window_bounds = array<i64: 1, 1>}, {transform_indices = @transform_12, window_bounds = array<i64: 1, 1, 128>}]} {
    %c0 = arith.constant 0 : index
    %c0_0 = arith.constant 0 : index
    %0 = vector.load %arg1[%c0, %c0_0] : memref<128x16xbf16, #tpu.memory_space<vmem>>, vector<128x16xbf16>
    %c0_1 = arith.constant 0 : index
    %c0_2 = arith.constant 0 : index
    %1 = vector.load %arg11[%c0_1, %c0_2] : memref<7x32xf32, #tpu.memory_space<vmem>>, vector<1x32xf32>
    %c1 = arith.constant 1 : index
    %c0_3 = arith.constant 0 : index
    %2 = vector.load %arg11[%c1, %c0_3] : memref<7x32xf32, #tpu.memory_space<vmem>>, vector<1x32xf32>
    %c2 = arith.constant 2 : index
    %c0_4 = arith.constant 0 : index
    %3 = vector.load %arg11[%c2, %c0_4] : memref<7x32xf32, #tpu.memory_space<vmem>>, vector<1x32xf32>
    %c3 = arith.constant 3 : index
    %c0_5 = arith.constant 0 : index
    %4 = vector.load %arg11[%c3, %c0_5] : memref<7x32xf32, #tpu.memory_space<vmem>>, vector<1x32xf32>
    %c4 = arith.constant 4 : index
    %c0_6 = arith.constant 0 : index
    %5 = vector.load %arg11[%c4, %c0_6] : memref<7x32xf32, #tpu.memory_space<vmem>>, vector<1x32xf32>
    %c5 = arith.constant 5 : index
    %c0_7 = arith.constant 0 : index
    %6 = vector.load %arg11[%c5, %c0_7] : memref<7x32xf32, #tpu.memory_space<vmem>>, vector<1x32xf32>
    %c6 = arith.constant 6 : index
    %c0_8 = arith.constant 0 : index
    %7 = vector.load %arg11[%c6, %c0_8] : memref<7x32xf32, #tpu.memory_space<vmem>>, vector<1x32xf32>
    %c0_9 = arith.constant 0 : index
    %c0_10 = arith.constant 0 : index
    %8 = vector.load %arg2[%c0_9, %c0_10] : memref<16x32xbf16, #tpu.memory_space<vmem>>, vector<16x32xbf16>
    %cst = arith.constant dense<0.000000e+00> : vector<128x32xf32>
    %9 = tpu.matmul %0, %8, %cst {dimension_numbers = #tpu.dot_dimension_numbers<[1], [0], [0], [1], [0, 0, 1, 1], [], []>} : vector<128x16xbf16>, vector<16x32xbf16>, vector<128x32xf32> -> vector<128x32xf32>
    %10 = vector.broadcast %1 : vector<1x32xf32> to vector<128x32xf32>
    %11 = arith.addf %9, %10 : vector<128x32xf32>
    %cst_11 = arith.constant 0.000000e+00 : f32
    %12 = vector.broadcast %cst_11 : f32 to vector<128x32xf32>
    %13 = arith.maximumf %11, %12 : vector<128x32xf32>
    %14 = arith.truncf %13 : vector<128x32xf32> to vector<128x32xbf16>
    %c0_12 = arith.constant 0 : index
    %c0_13 = arith.constant 0 : index
    %15 = vector.load %arg3[%c0_12, %c0_13] : memref<32x32xbf16, #tpu.memory_space<vmem>>, vector<32x32xbf16>
    %cst_14 = arith.constant dense<0.000000e+00> : vector<128x32xf32>
    %16 = tpu.matmul %14, %15, %cst_14 {dimension_numbers = #tpu.dot_dimension_numbers<[1], [0], [0], [1], [0, 0, 1, 1], [], []>} : vector<128x32xbf16>, vector<32x32xbf16>, vector<128x32xf32> -> vector<128x32xf32>
    %17 = vector.broadcast %2 : vector<1x32xf32> to vector<128x32xf32>
    %18 = arith.addf %16, %17 : vector<128x32xf32>
    %cst_15 = arith.constant 0.000000e+00 : f32
    %19 = vector.broadcast %cst_15 : f32 to vector<128x32xf32>
    %20 = arith.maximumf %18, %19 : vector<128x32xf32>
    %21 = arith.truncf %20 : vector<128x32xf32> to vector<128x32xbf16>
    %c0_16 = arith.constant 0 : index
    %c0_17 = arith.constant 0 : index
    %22 = vector.load %arg4[%c0_16, %c0_17] : memref<32x32xbf16, #tpu.memory_space<vmem>>, vector<32x32xbf16>
    %cst_18 = arith.constant dense<0.000000e+00> : vector<128x32xf32>
    %23 = tpu.matmul %21, %22, %cst_18 {dimension_numbers = #tpu.dot_dimension_numbers<[1], [0], [0], [1], [0, 0, 1, 1], [], []>} : vector<128x32xbf16>, vector<32x32xbf16>, vector<128x32xf32> -> vector<128x32xf32>
    %24 = vector.broadcast %3 : vector<1x32xf32> to vector<128x32xf32>
    %25 = arith.addf %23, %24 : vector<128x32xf32>
    %cst_19 = arith.constant 0.000000e+00 : f32
    %26 = vector.broadcast %cst_19 : f32 to vector<128x32xf32>
    %27 = arith.maximumf %25, %26 : vector<128x32xf32>
    %28 = arith.truncf %27 : vector<128x32xf32> to vector<128x32xbf16>
    %c0_20 = arith.constant 0 : index
    %c0_21 = arith.constant 0 : index
    %29 = vector.load %arg5[%c0_20, %c0_21] : memref<32x32xbf16, #tpu.memory_space<vmem>>, vector<32x32xbf16>
    %cst_22 = arith.constant dense<0.000000e+00> : vector<128x32xf32>
    %30 = tpu.matmul %28, %29, %cst_22 {dimension_numbers = #tpu.dot_dimension_numbers<[1], [0], [0], [1], [0, 0, 1, 1], [], []>} : vector<128x32xbf16>, vector<32x32xbf16>, vector<128x32xf32> -> vector<128x32xf32>
    %31 = vector.broadcast %4 : vector<1x32xf32> to vector<128x32xf32>
    %32 = arith.addf %30, %31 : vector<128x32xf32>
    %cst_23 = arith.constant 0.000000e+00 : f32
    %33 = vector.broadcast %cst_23 : f32 to vector<128x32xf32>
    %34 = arith.maximumf %32, %33 : vector<128x32xf32>
    %35 = vector.extract_strided_slice %0 {offsets = [0, 13], sizes = [128, 3], strides = [1, 1]} : vector<128x16xbf16> to vector<128x3xbf16>
    %36 = arith.extf %35 : vector<128x3xbf16> to vector<128x3xf32>
    %c0_24 = arith.constant 0 : index
    %c0_25 = arith.constant 0 : index
    %37 = vector.load %arg7[%c0_24, %c0_25] : memref<3x32xf32, #tpu.memory_space<vmem>>, vector<3x32xf32>
    %38 = vector.extract_strided_slice %36 {offsets = [0, 0], sizes = [128, 1], strides = [1, 1]} : vector<128x3xf32> to vector<128x1xf32>
    %39 = vector.extract_strided_slice %37 {offsets = [0, 0], sizes = [1, 32], strides = [1, 1]} : vector<3x32xf32> to vector<1x32xf32>
    %40 = vector.broadcast %38 : vector<128x1xf32> to vector<128x32xf32>
    %41 = vector.broadcast %39 : vector<1x32xf32> to vector<128x32xf32>
    %42 = arith.mulf %40, %41 : vector<128x32xf32>
    %43 = vector.extract_strided_slice %36 {offsets = [0, 1], sizes = [128, 1], strides = [1, 1]} : vector<128x3xf32> to vector<128x1xf32>
    %44 = vector.extract_strided_slice %37 {offsets = [1, 0], sizes = [1, 32], strides = [1, 1]} : vector<3x32xf32> to vector<1x32xf32>
    %45 = vector.broadcast %43 : vector<128x1xf32> to vector<128x32xf32>
    %46 = vector.broadcast %44 : vector<1x32xf32> to vector<128x32xf32>
    %47 = arith.mulf %45, %46 : vector<128x32xf32>
    %48 = arith.addf %42, %47 : vector<128x32xf32>
    %49 = vector.extract_strided_slice %36 {offsets = [0, 2], sizes = [128, 1], strides = [1, 1]} : vector<128x3xf32> to vector<128x1xf32>
    %50 = vector.extract_strided_slice %37 {offsets = [2, 0], sizes = [1, 32], strides = [1, 1]} : vector<3x32xf32> to vector<1x32xf32>
    %51 = vector.broadcast %49 : vector<128x1xf32> to vector<128x32xf32>
    %52 = vector.broadcast %50 : vector<1x32xf32> to vector<128x32xf32>
    %53 = arith.mulf %51, %52 : vector<128x32xf32>
    %54 = arith.addf %48, %53 : vector<128x32xf32>
    %55 = arith.truncf %34 : vector<128x32xf32> to vector<128x32xbf16>
    %c0_26 = arith.constant 0 : index
    %c0_27 = arith.constant 0 : index
    %56 = vector.load %arg6[%c0_26, %c0_27] : memref<32x32xbf16, #tpu.memory_space<vmem>>, vector<32x32xbf16>
    %cst_28 = arith.constant dense<0.000000e+00> : vector<128x32xf32>
    %57 = tpu.matmul %55, %56, %cst_28 {dimension_numbers = #tpu.dot_dimension_numbers<[1], [0], [0], [1], [0, 0, 1, 1], [], []>} : vector<128x32xbf16>, vector<32x32xbf16>, vector<128x32xf32> -> vector<128x32xf32>
    %58 = arith.addf %57, %54 : vector<128x32xf32>
    %59 = vector.broadcast %5 : vector<1x32xf32> to vector<128x32xf32>
    %60 = arith.addf %58, %59 : vector<128x32xf32>
    %cst_29 = arith.constant 0.000000e+00 : f32
    %61 = vector.broadcast %cst_29 : f32 to vector<128x32xf32>
    %62 = arith.maximumf %60, %61 : vector<128x32xf32>
    %63 = arith.truncf %62 : vector<128x32xf32> to vector<128x32xbf16>
    %c0_30 = arith.constant 0 : index
    %c0_31 = arith.constant 0 : index
    %64 = vector.load %arg8[%c0_30, %c0_31] : memref<32x32xbf16, #tpu.memory_space<vmem>>, vector<32x32xbf16>
    %cst_32 = arith.constant dense<0.000000e+00> : vector<128x32xf32>
    %65 = tpu.matmul %63, %64, %cst_32 {dimension_numbers = #tpu.dot_dimension_numbers<[1], [0], [0], [1], [0, 0, 1, 1], [], []>} : vector<128x32xbf16>, vector<32x32xbf16>, vector<128x32xf32> -> vector<128x32xf32>
    %66 = vector.broadcast %6 : vector<1x32xf32> to vector<128x32xf32>
    %67 = arith.addf %65, %66 : vector<128x32xf32>
    %cst_33 = arith.constant 0.000000e+00 : f32
    %68 = vector.broadcast %cst_33 : f32 to vector<128x32xf32>
    %69 = arith.maximumf %67, %68 : vector<128x32xf32>
    %70 = arith.truncf %69 : vector<128x32xf32> to vector<128x32xbf16>
    %c0_34 = arith.constant 0 : index
    %c0_35 = arith.constant 0 : index
    %71 = vector.load %arg9[%c0_34, %c0_35] : memref<32x32xbf16, #tpu.memory_space<vmem>>, vector<32x32xbf16>
    %cst_36 = arith.constant dense<0.000000e+00> : vector<128x32xf32>
    %72 = tpu.matmul %70, %71, %cst_36 {dimension_numbers = #tpu.dot_dimension_numbers<[1], [0], [0], [1], [0, 0, 1, 1], [], []>} : vector<128x32xbf16>, vector<32x32xbf16>, vector<128x32xf32> -> vector<128x32xf32>
    %73 = vector.broadcast %7 : vector<1x32xf32> to vector<128x32xf32>
    %74 = arith.addf %72, %73 : vector<128x32xf32>
    %cst_37 = arith.constant 0.000000e+00 : f32
    %75 = vector.broadcast %cst_37 : f32 to vector<128x32xf32>
    %76 = arith.maximumf %74, %75 : vector<128x32xf32>
    %c0_38 = arith.constant 0 : index
    %c0_39 = arith.constant 0 : index
    %77 = vector.load %arg10[%c0_38, %c0_39] : memref<8x32xbf16, #tpu.memory_space<vmem>>, vector<8x32xbf16>
    %78 = arith.truncf %76 : vector<128x32xf32> to vector<128x32xbf16>
    %cst_40 = arith.constant dense<0.000000e+00> : vector<8x128xf32>
    %79 = tpu.matmul %77, %78, %cst_40 {dimension_numbers = #tpu.dot_dimension_numbers<[1], [1], [0], [0], [0, 0, 1, 0], [], []>} : vector<8x32xbf16>, vector<128x32xbf16>, vector<8x128xf32> -> vector<8x128xf32>
    %80 = vector.extract_strided_slice %79 {offsets = [0, 0], sizes = [1, 128], strides = [1, 1]} : vector<8x128xf32> to vector<1x128xf32>
    %c0_41 = arith.constant 0 : index
    %c0_42 = arith.constant 0 : index
    %81 = vector.load %arg12[%c0_41, %c0_42] : memref<1x1xf32, #tpu.memory_space<vmem>>, vector<1x1xf32>
    %82 = vector.broadcast %81 : vector<1x1xf32> to vector<1x128xf32>
    %83 = arith.addf %80, %82 : vector<1x128xf32>
    %cst_43 = arith.constant 0.000000e+00 : f32
    %84 = vector.broadcast %cst_43 : f32 to vector<1x128xf32>
    %85 = arith.subf %84, %83 : vector<1x128xf32>
    %86 = math.exp %85 : vector<1x128xf32>
    %cst_44 = arith.constant 1.000000e+00 : f32
    %87 = vector.broadcast %cst_44 : f32 to vector<1x128xf32>
    %88 = arith.addf %87, %86 : vector<1x128xf32>
    %cst_45 = arith.constant 1.000000e+00 : f32
    %89 = vector.broadcast %cst_45 : f32 to vector<1x128xf32>
    %90 = arith.divf %89, %88 : vector<1x128xf32>
    %cst_46 = arith.constant 3.000000e+00 : f32
    %91 = vector.broadcast %cst_46 : f32 to vector<1x128xf32>
    %92 = arith.mulf %91, %90 : vector<1x128xf32>
    %c0_47 = arith.constant 0 : index
    %c0_48 = arith.constant 0 : index
    %c0_49 = arith.constant 0 : index
    %93 = vector.load %arg13[%c0_47, %c0_48, %c0_49] : memref<1x1x128xf32, #tpu.memory_space<vmem>>, vector<1x1x128xf32>
    %94 = vector.shape_cast %93 : vector<1x1x128xf32> to vector<1x128xf32>
    %95 = vector.shape_cast %92 : vector<1x128xf32> to vector<1x1x128xf32>
    tpu.vector_store %arg13[%c0_47, %c0_48, %c0_49], %95 {strides = array<i32>} : memref<1x1x128xf32, #tpu.memory_space<vmem>>, vector<1x1x128xf32>,
    return
  }
  func.func @transform_0(%arg0: i32) -> (i32, i32) {
    %c0_i32 = arith.constant 0 : i32
    %c0_i32_0 = arith.constant 0 : i32
    return %arg0, %c0_i32 : i32, i32
  }
  func.func @transform_1(%arg0: i32) -> (i32, i32) {
    %c0_i32 = arith.constant 0 : i32
    %c0_i32_0 = arith.constant 0 : i32
    %c0_i32_1 = arith.constant 0 : i32
    return %c0_i32, %c0_i32_0 : i32, i32
  }
  func.func @transform_2(%arg0: i32) -> (i32, i32) {
    %c0_i32 = arith.constant 0 : i32
    %c0_i32_0 = arith.constant 0 : i32
    %c0_i32_1 = arith.constant 0 : i32
    return %c0_i32, %c0_i32_0 : i32, i32
  }
  func.func @transform_3(%arg0: i32) -> (i32, i32) {
    %c0_i32 = arith.constant 0 : i32
    %c0_i32_0 = arith.constant 0 : i32
    %c0_i32_1 = arith.constant 0 : i32
    return %c0_i32, %c0_i32_0 : i32, i32
  }
  func.func @transform_4(%arg0: i32) -> (i32, i32) {
    %c0_i32 = arith.constant 0 : i32
    %c0_i32_0 = arith.constant 0 : i32
    %c0_i32_1 = arith.constant 0 : i32
    return %c0_i32, %c0_i32_0 : i32, i32
  }
  func.func @transform_5(%arg0: i32) -> (i32, i32) {
    %c0_i32 = arith.constant 0 : i32
    %c0_i32_0 = arith.constant 0 : i32
    %c0_i32_1 = arith.constant 0 : i32
    return %c0_i32, %c0_i32_0 : i32, i32
  }
  func.func @transform_6(%arg0: i32) -> (i32, i32) {
    %c0_i32 = arith.constant 0 : i32
    %c0_i32_0 = arith.constant 0 : i32
    %c0_i32_1 = arith.constant 0 : i32
    return %c0_i32, %c0_i32_0 : i32, i32
  }
  func.func @transform_7(%arg0: i32) -> (i32, i32) {
    %c0_i32 = arith.constant 0 : i32
    %c0_i32_0 = arith.constant 0 : i32
    %c0_i32_1 = arith.constant 0 : i32
    return %c0_i32, %c0_i32_0 : i32, i32
  }
  func.func @transform_8(%arg0: i32) -> (i32, i32) {
    %c0_i32 = arith.constant 0 : i32
    %c0_i32_0 = arith.constant 0 : i32
    %c0_i32_1 = arith.constant 0 : i32
    return %c0_i32, %c0_i32_0 : i32, i32
  }
  func.func @transform_9(%arg0: i32) -> (i32, i32) {
    %c0_i32 = arith.constant 0 : i32
    %c0_i32_0 = arith.constant 0 : i32
    %c0_i32_1 = arith.constant 0 : i32
    return %c0_i32, %c0_i32_0 : i32, i32
  }
  func.func @transform_10(%arg0: i32) -> (i32, i32) {
    %c0_i32 = arith.constant 0 : i32
    %c0_i32_0 = arith.constant 0 : i32
    %c0_i32_1 = arith.constant 0 : i32
    return %c0_i32, %c0_i32_0 : i32, i32
  }
  func.func @transform_11(%arg0: i32) -> (i32, i32) {
    %c0_i32 = arith.constant 0 : i32
    %c0_i32_0 = arith.constant 0 : i32
    %c0_i32_1 = arith.constant 0 : i32
    return %c0_i32, %c0_i32_0 : i32, i32
  }
  func.func @transform_12(%arg0: i32) -> (i32, i32, i32) {
    %c0_i32 = arith.constant 0 : i32
    %c0_i32_0 = arith.constant 0 : i32
    %c0_i32_1 = arith.constant 0 : i32
    return %arg0, %c0_i32, %c0_i32_0 : i32, i32, i32
  }
}

</mosaic_0001>

<llo_original>
// kernel: deepsdf_forward.1
$region0: #{deepsdf_forward.1}
  #allocation0 [shape = 'u32[]', space=smem, size = 0x4, offset = 0x4, fixed_abs, tag = 'smem constant byte address 0x4 - core index']
  #allocation1 [shape = 'u32[72,128]{1,0:T(1,128)}', space=vmem, size = 0x9000, scoped, tag = 'internal scratch']
  #allocation2 [shape = 'f32[1,1]{1,0:T(1,128)S(1)}', space=vmem, size = 0x200, scoped, tag = 'scoped memory for deepsdf_forward.1']
  %s0 = inlined_call_operand.vmem [shape: bf16[256,16], index: 0, kind: input, shape index: {}]
  %s1 = inlined_call_operand.vmem [shape: bf16[16,32], index: 1, kind: input, shape index: {}]
  %s2 = inlined_call_operand.vmem [shape: bf16[32,32], index: 2, kind: input, shape index: {}]
  %s3 = inlined_call_operand.vmem [shape: bf16[32,32], index: 3, kind: input, shape index: {}]
  %s4 = inlined_call_operand.vmem [shape: bf16[32,32], index: 4, kind: input, shape index: {}]
  %s5 = inlined_call_operand.vmem [shape: bf16[32,32], index: 5, kind: input, shape index: {}]
  %s6 = inlined_call_operand.vmem [shape: f32[3,32], index: 6, kind: input, shape index: {}]
  %s7 = inlined_call_operand.vmem [shape: bf16[32,32], index: 7, kind: input, shape index: {}]
  %s8 = inlined_call_operand.vmem [shape: bf16[32,32], index: 8, kind: input, shape index: {}]
  %s9 = inlined_call_operand.vmem [shape: bf16[8,32], index: 9, kind: input, shape index: {}]
  %s10 = inlined_call_operand.vmem [shape: f32[7,32], index: 10, kind: input, shape index: {}]
  %s11 = inlined_call_operand.<no memory space> [shape: f32[1,1], index: 11, kind: input, shape index: {}]
  %s12 = inlined_call_operand.hbm [shape: f32[2,1,128], index: 12, kind: output, shape index: {}]
  %s13 = sld [smem:[#allocation0]]
  $region81: #{deepsdf_forward.1} parent=0
    _
  %s15 = ssub.s32 1, %s13
  %s16 = scalar_select 0, %s15, %s13
  %v17 = vstv %s11
  %18 = vst [vmem:[#allocation2] sm:$0x1] %v17
  $region1: #{deepsdf_forward.1} parent=0
    #allocation3 [shape = 'u8[1024]{0}', space=vmem, size = 0x400, scoped, tag = 'output window, operand 0']
    #allocation4 [shape = 's32[2]{0}', space=sflag, size = 0x8, scoped, tag = 'scoped memory for deepsdf_forward.1']
    %19 = vsyncpa [#allocation4], 0
    %s20 = scalar_lea.sflag [#allocation4], 1
    %21 = vsyncpa %s20, 0
    loop: start=0, step=1, limit=4
    $region2: #{deepsdf_forward.1} parent=1 // loop_pre_header
      _
    $region3: #{deepsdf_forward.1} parent=1 // loop_header
      %s23 = sphi 0, %s27
      %p24 = scmp.ge.s32.totalorder %s23, 4
      %s33 = sphi 0, %s35
      %s36 = sphi 0, %s33
      %s37 = sphi 0, %s36
      %s53 = sphi 0, %s37
      %s57 = sphi 0, %s57
      %s59 = sphi 0, %s57
      %s60 = sphi 0, %s59
      %s74 = sphi 0, %s60
      %s78 = sphi 0, %s78
      %s80 = sphi 0, %s78
      %s81 = sphi 0, %s80
      %s95 = sphi 0, %s81
      %s99 = sphi 0, %s99
      %s101 = sphi 0, %s99
      %s102 = sphi 0, %s101
      %s116 = sphi 0, %s102
      %s120 = sphi 0, %s120
      %s122 = sphi 0, %s120
      %s123 = sphi 0, %s122
      %s137 = sphi 0, %s123
      %s141 = sphi 0, %s141
      %s143 = sphi 0, %s141
      %s144 = sphi 0, %s143
      %s158 = sphi 0, %s144
      %s162 = sphi 0, %s162
      %s164 = sphi 0, %s162
      %s165 = sphi 0, %s164
      %s179 = sphi 0, %s165
      %s183 = sphi 0, %s183
      %s185 = sphi 0, %s183
      %s186 = sphi 0, %s185
      %s200 = sphi 0, %s186
      %s204 = sphi 0, %s204
      %s206 = sphi 0, %s204
      %s207 = sphi 0, %s206
      %s221 = sphi 0, %s207
      %s225 = sphi 0, %s225
      %s227 = sphi 0, %s225
      %s228 = sphi 0, %s227
      %s242 = sphi 0, %s228
      %s246 = sphi 0, %s246
      %s248 = sphi 0, %s246
      %s249 = sphi 0, %s248
      %s263 = sphi 0, %s249
      %s267 = sphi 0, %s267
      %s269 = sphi 0, %s267
      %s270 = sphi 0, %s269
      %s284 = sphi 0, %s270
      %s290 = sphi 0, %s292
      %s293 = sphi 0, %s290
      %s294 = sphi 0, %s293
      %s310 = sphi 0, %s294
    $region4: #{deepsdf_forward.1} parent=1 // loop_header_branch
      %26 = sbr.rel (%p24) target = $region8
    $region5: #{deepsdf_forward.1} parent=1 // loop_body
      %s28 = ssub.s32 %s23, 1
      %s29 = ssub.s32 %s23, 2
      %s30 = sadd.s32 %s23, 1
      %s31 = ssub.s32 %s23, %s30
      %p32 = scmp.eq.s32.totalorder %s31, 0
      %s34 = sadd.s32 %s33, 1
      %s35 = scalar_select %p32, %s33, %s34
      %p38 = pneg %p32
      %p39 = scmp.eq.s32.totalorder %s23, 1
      %p40 = por %p38, %p39
      %p41 = scmp.ne.s32.totalorder %s33, %s36
      %p42 = scmp.eq.s32.totalorder %s23, 0
      %p43 = por %p41, %p42
      %p44 = scmp.ne.s32.totalorder %s33, %s36
      %p45 = scmp.eq.s32.totalorder %s28, 1
      %p46 = por %p44, %p45
      %p47 = scmp.ne.s32.totalorder %s36, %s37
      %p48 = scmp.eq.s32.totalorder %s28, 0
      %p49 = por %p47, %p48
      %p50 = scmp.ne.s32.totalorder %s36, %s37
      %p51 = scmp.eq.s32.totalorder %s29, 1
      %p52 = por %p50, %p51
      %p54 = scmp.ne.s32.totalorder %s37, %s53
      %p55 = scmp.eq.s32.totalorder %s29, 0
      %p56 = por %p54, %p55
      %s58 = sadd.s32 %s57, 1
      %p61 = scmp.eq.s32.totalorder %s23, 1
      %p62 = scmp.ne.s32.totalorder %s57, %s59
      %p63 = scmp.eq.s32.totalorder %s23, 0
      %p64 = por %p62, %p63
      %p65 = scmp.ne.s32.totalorder %s57, %s59
      %p66 = scmp.eq.s32.totalorder %s28, 1
      %p67 = por %p65, %p66
      %p68 = scmp.ne.s32.totalorder %s59, %s60
      %p69 = scmp.eq.s32.totalorder %s28, 0
      %p70 = por %p68, %p69
      %p71 = scmp.ne.s32.totalorder %s59, %s60
      %p72 = scmp.eq.s32.totalorder %s29, 1
      %p73 = por %p71, %p72
      %p75 = scmp.ne.s32.totalorder %s60, %s74
      %p76 = scmp.eq.s32.totalorder %s29, 0
      %p77 = por %p75, %p76
      %s79 = sadd.s32 %s78, 1
      %p82 = scmp.eq.s32.totalorder %s23, 1
      %p83 = scmp.ne.s32.totalorder %s78, %s80
      %p84 = scmp.eq.s32.totalorder %s23, 0
      %p85 = por %p83, %p84
      %p86 = scmp.ne.s32.totalorder %s78, %s80
      %p87 = scmp.eq.s32.totalorder %s28, 1
      %p88 = por %p86, %p87
      %p89 = scmp.ne.s32.totalorder %s80, %s81
      %p90 = scmp.eq.s32.totalorder %s28, 0
      %p91 = por %p89, %p90
      %p92 = scmp.ne.s32.totalorder %s80, %s81
      %p93 = scmp.eq.s32.totalorder %s29, 1
      %p94 = por %p92, %p93
      %p96 = scmp.ne.s32.totalorder %s81, %s95
      %p97 = scmp.eq.s32.totalorder %s29, 0
      %p98 = por %p96, %p97
      %s100 = sadd.s32 %s99, 1
      %p103 = scmp.eq.s32.totalorder %s23, 1
      %p104 = scmp.ne.s32.totalorder %s99, %s101
      %p105 = scmp.eq.s32.totalorder %s23, 0
      %p106 = por %p104, %p105
      %p107 = scmp.ne.s32.totalorder %s99, %s101
      %p108 = scmp.eq.s32.totalorder %s28, 1
      %p109 = por %p107, %p108
      %p110 = scmp.ne.s32.totalorder %s101, %s102
      %p111 = scmp.eq.s32.totalorder %s28, 0
      %p112 = por %p110, %p111
      %p113 = scmp.ne.s32.totalorder %s101, %s102
      %p114 = scmp.eq.s32.totalorder %s29, 1
      %p115 = por %p113, %p114
      %p117 = scmp.ne.s32.totalorder %s102, %s116
      %p118 = scmp.eq.s32.totalorder %s29, 0
      %p119 = por %p117, %p118
      %s121 = sadd.s32 %s120, 1
      %p124 = scmp.eq.s32.totalorder %s23, 1
      %p125 = scmp.ne.s32.totalorder %s120, %s122
      %p126 = scmp.eq.s32.totalorder %s23, 0
      %p127 = por %p125, %p126
      %p128 = scmp.ne.s32.totalorder %s120, %s122
      %p129 = scmp.eq.s32.totalorder %s28, 1
      %p130 = por %p128, %p129
      %p131 = scmp.ne.s32.totalorder %s122, %s123
      %p132 = scmp.eq.s32.totalorder %s28, 0
      %p133 = por %p131, %p132
      %p134 = scmp.ne.s32.totalorder %s122, %s123
      %p135 = scmp.eq.s32.totalorder %s29, 1
      %p136 = por %p134, %p135
      %p138 = scmp.ne.s32.totalorder %s123, %s137
      %p139 = scmp.eq.s32.totalorder %s29, 0
      %p140 = por %p138, %p139
      %s142 = sadd.s32 %s141, 1
      %p145 = scmp.eq.s32.totalorder %s23, 1
      %p146 = scmp.ne.s32.totalorder %s141, %s143
      %p147 = scmp.eq.s32.totalorder %s23, 0
      %p148 = por %p146, %p147
      %p149 = scmp.ne.s32.totalorder %s141, %s143
      %p150 = scmp.eq.s32.totalorder %s28, 1
      %p151 = por %p149, %p150
      %p152 = scmp.ne.s32.totalorder %s143, %s144
      %p153 = scmp.eq.s32.totalorder %s28, 0
      %p154 = por %p152, %p153
      %p155 = scmp.ne.s32.totalorder %s143, %s144
      %p156 = scmp.eq.s32.totalorder %s29, 1
      %p157 = por %p155, %p156
      %p159 = scmp.ne.s32.totalorder %s144, %s158
      %p160 = scmp.eq.s32.totalorder %s29, 0
      %p161 = por %p159, %p160
      %s163 = sadd.s32 %s162, 1
      %p166 = scmp.eq.s32.totalorder %s23, 1
      %p167 = scmp.ne.s32.totalorder %s162, %s164
      %p168 = scmp.eq.s32.totalorder %s23, 0
      %p169 = por %p167, %p168
      %p170 = scmp.ne.s32.totalorder %s162, %s164
      %p171 = scmp.eq.s32.totalorder %s28, 1
      %p172 = por %p170, %p171
      %p173 = scmp.ne.s32.totalorder %s164, %s165
      %p174 = scmp.eq.s32.totalorder %s28, 0
      %p175 = por %p173, %p174
      %p176 = scmp.ne.s32.totalorder %s164, %s165
      %p177 = scmp.eq.s32.totalorder %s29, 1
      %p178 = por %p176, %p177
      %p180 = scmp.ne.s32.totalorder %s165, %s179
      %p181 = scmp.eq.s32.totalorder %s29, 0
      %p182 = por %p180, %p181
      %s184 = sadd.s32 %s183, 1
      %p187 = scmp.eq.s32.totalorder %s23, 1
      %p188 = scmp.ne.s32.totalorder %s183, %s185
      %p189 = scmp.eq.s32.totalorder %s23, 0
      %p190 = por %p188, %p189
      %p191 = scmp.ne.s32.totalorder %s183, %s185
      %p192 = scmp.eq.s32.totalorder %s28, 1
      %p193 = por %p191, %p192
      %p194 = scmp.ne.s32.totalorder %s185, %s186
      %p195 = scmp.eq.s32.totalorder %s28, 0
      %p196 = por %p194, %p195
      %p197 = scmp.ne.s32.totalorder %s185, %s186
      %p198 = scmp.eq.s32.totalorder %s29, 1
      %p199 = por %p197, %p198
      %p201 = scmp.ne.s32.totalorder %s186, %s200
      %p202 = scmp.eq.s32.totalorder %s29, 0
      %p203 = por %p201, %p202
      %s205 = sadd.s32 %s204, 1
      %p208 = scmp.eq.s32.totalorder %s23, 1
      %p209 = scmp.ne.s32.totalorder %s204, %s206
      %p210 = scmp.eq.s32.totalorder %s23, 0
      %p211 = por %p209, %p210
      %p212 = scmp.ne.s32.totalorder %s204, %s206
      %p213 = scmp.eq.s32.totalorder %s28, 1
      %p214 = por %p212, %p213
      %p215 = scmp.ne.s32.totalorder %s206, %s207
      %p216 = scmp.eq.s32.totalorder %s28, 0
      %p217 = por %p215, %p216
      %p218 = scmp.ne.s32.totalorder %s206, %s207
      %p219 = scmp.eq.s32.totalorder %s29, 1
      %p220 = por %p218, %p219
      %p222 = scmp.ne.s32.totalorder %s207, %s221
      %p223 = scmp.eq.s32.totalorder %s29, 0
      %p224 = por %p222, %p223
      %s226 = sadd.s32 %s225, 1
      %p229 = scmp.eq.s32.totalorder %s23, 1
      %p230 = scmp.ne.s32.totalorder %s225, %s227
      %p231 = scmp.eq.s32.totalorder %s23, 0
      %p232 = por %p230, %p231
      %p233 = scmp.ne.s32.totalorder %s225, %s227
      %p234 = scmp.eq.s32.totalorder %s28, 1
      %p235 = por %p233, %p234
      %p236 = scmp.ne.s32.totalorder %s227, %s228
      %p237 = scmp.eq.s32.totalorder %s28, 0
      %p238 = por %p236, %p237
      %p239 = scmp.ne.s32.totalorder %s227, %s228
      %p240 = scmp.eq.s32.totalorder %s29, 1
      %p241 = por %p239, %p240
      %p243 = scmp.ne.s32.totalorder %s228, %s242
      %p244 = scmp.eq.s32.totalorder %s29, 0
      %p245 = por %p243, %p244
      %s247 = sadd.s32 %s246, 1
      %p250 = scmp.eq.s32.totalorder %s23, 1
      %p251 = scmp.ne.s32.totalorder %s246, %s248
      %p252 = scmp.eq.s32.totalorder %s23, 0
      %p253 = por %p251, %p252
      %p254 = scmp.ne.s32.totalorder %s246, %s248
      %p255 = scmp.eq.s32.totalorder %s28, 1
      %p256 = por %p254, %p255
      %p257 = scmp.ne.s32.totalorder %s248, %s249
      %p258 = scmp.eq.s32.totalorder %s28, 0
      %p259 = por %p257, %p258
      %p260 = scmp.ne.s32.totalorder %s248, %s249
      %p261 = scmp.eq.s32.totalorder %s29, 1
      %p262 = por %p260, %p261
      %p264 = scmp.ne.s32.totalorder %s249, %s263
      %p265 = scmp.eq.s32.totalorder %s29, 0
      %p266 = por %p264, %p265
      %s268 = sadd.s32 %s267, 1
      %p271 = scmp.eq.s32.totalorder %s23, 1
      %p272 = scmp.ne.s32.totalorder %s267, %s269
      %p273 = scmp.eq.s32.totalorder %s23, 0
      %p274 = por %p272, %p273
      %p275 = scmp.ne.s32.totalorder %s267, %s269
      %p276 = scmp.eq.s32.totalorder %s28, 1
      %p277 = por %p275, %p276
      %p278 = scmp.ne.s32.totalorder %s269, %s270
      %p279 = scmp.eq.s32.totalorder %s28, 0
      %p280 = por %p278, %p279
      %p281 = scmp.ne.s32.totalorder %s269, %s270
      %p282 = scmp.eq.s32.totalorder %s29, 1
      %p283 = por %p281, %p282
      %p285 = scmp.ne.s32.totalorder %s270, %s284
      %p286 = scmp.eq.s32.totalorder %s29, 0
      %p287 = por %p285, %p286
      %s288 = ssub.s32 %s23, %s30
      %p289 = scmp.eq.s32.totalorder %s288, 0
      %s291 = sadd.s32 %s290, 1
      %s292 = scalar_select %p289, %s290, %s291
      %p295 = pneg %p289
      %p296 = scmp.eq.s32.totalorder %s23, 1
      %p297 = por %p295, %p296
      %p298 = scmp.ne.s32.totalorder %s290, %s293
      %p299 = scmp.eq.s32.totalorder %s23, 0
      %p300 = por %p298, %p299
      %p301 = scmp.ne.s32.totalorder %s290, %s293
      %p302 = scmp.eq.s32.totalorder %s28, 1
      %p303 = por %p301, %p302
      %p304 = scmp.ne.s32.totalorder %s293, %s294
      %p305 = scmp.eq.s32.totalorder %s28, 0
      %p306 = por %p304, %p305
      %p307 = scmp.ne.s32.totalorder %s293, %s294
      %p308 = scmp.eq.s32.totalorder %s29, 1
      %p309 = por %p307, %p308
      %p311 = scmp.ne.s32.totalorder %s294, %s310
      %p312 = scmp.eq.s32.totalorder %s29, 0
      %p313 = por %p311, %p312
      %p314 = scmp.le.s32.totalorder 1, %s23
      %p315 = scmp.lt.s32.totalorder %s23, 3
      %p316 = pnand %p314, %p315
      %p317 = pneg %p316
      // Predicated region
      $region9: #{deepsdf_forward.1} parent=5 // pred_check
        _
      $region10: #{deepsdf_forward.1} parent=5 // pred_check_branch
        %319 = sbr.rel (%p316) target = $region12
      $region11: #{deepsdf_forward.1} parent=5 // pred_region
        %s320 = ssub.s32 %s23, 1
        // Predicated region
        $region13: #{deepsdf_forward.1} parent=11 // pred_check
          %p321 = pneg %p70
        $region14: #{deepsdf_forward.1} parent=11 // pred_check_branch
          %323 = sbr.rel (%p321) target = $region16
        $region15: #{deepsdf_forward.1} parent=11 // pred_region
          _
        $region16: #{deepsdf_forward.1} parent=11 // pred_fallthru
          _
        // Predicated region
        $region17: #{deepsdf_forward.1} parent=11 // pred_check
          %p324 = pneg %p91
        $region18: #{deepsdf_forward.1} parent=11 // pred_check_branch
          %326 = sbr.rel (%p324) target = $region20
        $region19: #{deepsdf_forward.1} parent=11 // pred_region
          _
        $region20: #{deepsdf_forward.1} parent=11 // pred_fallthru
          _
        // Predicated region
        $region21: #{deepsdf_forward.1} parent=11 // pred_check
          %p327 = pneg %p112
        $region22: #{deepsdf_forward.1} parent=11 // pred_check_branch
          %329 = sbr.rel (%p327) target = $region24
        $region23: #{deepsdf_forward.1} parent=11 // pred_region
          _
        $region24: #{deepsdf_forward.1} parent=11 // pred_fallthru
          _
        // Predicated region
        $region25: #{deepsdf_forward.1} parent=11 // pred_check
          %p330 = pneg %p133
        $region26: #{deepsdf_forward.1} parent=11 // pred_check_branch
          %332 = sbr.rel (%p330) target = $region28
        $region27: #{deepsdf_forward.1} parent=11 // pred_region
          _
        $region28: #{deepsdf_forward.1} parent=11 // pred_fallthru
          _
        // Predicated region
        $region29: #{deepsdf_forward.1} parent=11 // pred_check
          %p333 = pneg %p154
        $region30: #{deepsdf_forward.1} parent=11 // pred_check_branch
          %335 = sbr.rel (%p333) target = $region32
        $region31: #{deepsdf_forward.1} parent=11 // pred_region
          _
        $region32: #{deepsdf_forward.1} parent=11 // pred_fallthru
          _
        // Predicated region
        $region33: #{deepsdf_forward.1} parent=11 // pred_check
          %p336 = pneg %p175
        $region34: #{deepsdf_forward.1} parent=11 // pred_check_branch
          %338 = sbr.rel (%p336) target = $region36
        $region35: #{deepsdf_forward.1} parent=11 // pred_region
          _
        $region36: #{deepsdf_forward.1} parent=11 // pred_fallthru
          _
        // Predicated region
        $region37: #{deepsdf_forward.1} parent=11 // pred_check
          %p339 = pneg %p196
        $region38: #{deepsdf_forward.1} parent=11 // pred_check_branch
          %341 = sbr.rel (%p339) target = $region40
        $region39: #{deepsdf_forward.1} parent=11 // pred_region
          _
        $region40: #{deepsdf_forward.1} parent=11 // pred_fallthru
          _
        // Predicated region
        $region41: #{deepsdf_forward.1} parent=11 // pred_check
          %p342 = pneg %p217
        $region42: #{deepsdf_forward.1} parent=11 // pred_check_branch
          %344 = sbr.rel (%p342) target = $region44
        $region43: #{deepsdf_forward.1} parent=11 // pred_region
          _
        $region44: #{deepsdf_forward.1} parent=11 // pred_fallthru
          _
        // Predicated region
        $region45: #{deepsdf_forward.1} parent=11 // pred_check
          %p345 = pneg %p238
        $region46: #{deepsdf_forward.1} parent=11 // pred_check_branch
          %347 = sbr.rel (%p345) target = $region48
        $region47: #{deepsdf_forward.1} parent=11 // pred_region
          _
        $region48: #{deepsdf_forward.1} parent=11 // pred_fallthru
          _
        // Predicated region
        $region49: #{deepsdf_forward.1} parent=11 // pred_check
          %p348 = pneg %p259
        $region50: #{deepsdf_forward.1} parent=11 // pred_check_branch
          %350 = sbr.rel (%p348) target = $region52
        $region51: #{deepsdf_forward.1} parent=11 // pred_region
          _
        $region52: #{deepsdf_forward.1} parent=11 // pred_fallthru
          _
        // Predicated region
        $region53: #{deepsdf_forward.1} parent=11 // pred_check
          %p351 = pneg %p280
        $region54: #{deepsdf_forward.1} parent=11 // pred_check_branch
          %353 = sbr.rel (%p351) target = $region56
        $region55: #{deepsdf_forward.1} parent=11 // pred_region
          _
        $region56: #{deepsdf_forward.1} parent=11 // pred_fallthru
          _
      $region12: #{deepsdf_forward.1} parent=5 // pred_fallthru
        _
      %p354 = scmp.lt.s32.totalorder %s23, 2
      // Predicated region
      $region57: #{deepsdf_forward.1} parent=5 // pred_check
        %p355 = pneg %p354
      $region58: #{deepsdf_forward.1} parent=5 // pred_check_branch
        %357 = sbr.rel (%p355) target = $region60
      $region59: #{deepsdf_forward.1} parent=5 // pred_region
        // Predicated region
        $region61: #{deepsdf_forward.1} parent=59 // pred_check
          %p358 = pneg %p43
        $region62: #{deepsdf_forward.1} parent=59 // pred_check_branch
          %360 = sbr.rel (%p358) target = $region64
        $region63: #{deepsdf_forward.1} parent=59 // pred_region
          %s361 = smul.u32 16, %s23
          %p362 = scmp.lt.s32.totalorder %s361, 31
          %s363 = scalar_select %p362, %s361, 31
          %s364 = smul.addr %s363, 4
          %s365 = scalar_lea.vmem %s0, %s364
          %s366 = smul.u32 16, %s23
        $region64: #{deepsdf_forward.1} parent=59 // pred_fallthru
          _
      $region60: #{deepsdf_forward.1} parent=5 // pred_fallthru
        _
      %p367 = scmp.le.s32.totalorder 1, %s23
      %p368 = scmp.lt.s32.totalorder %s23, 3
      %p369 = pnand %p367, %p368
      %p370 = pneg %p369
      // Predicated region
      $region65: #{deepsdf_forward.1} parent=5 // pred_check
        _
      $region66: #{deepsdf_forward.1} parent=5 // pred_check_branch
        %372 = sbr.rel (%p369) target = $region68
      $region67: #{deepsdf_forward.1} parent=5 // pred_region
        %s373 = ssub.s32 %s23, 1
        %s374 = smul.u32 16, %s28
        %p375 = scmp.lt.s32.totalorder %s374, 31
        %s376 = scalar_select %p375, %s374, 31
        %s377 = smul.addr %s376, 4
        %s378 = scalar_lea.vmem %s0, %s377
        %p379 = pneg %p49
        %p380 = pneg %p46
        %p381 = pneg %p70
        %p382 = pneg %p67
        %p383 = pneg %p91
        %p384 = pneg %p88
        %p385 = pneg %p112
        %p386 = pneg %p109
        %p387 = pneg %p133
        %p388 = pneg %p130
        %p389 = pneg %p154
        %p390 = pneg %p151
        %p391 = pneg %p175
        %p392 = pneg %p172
        %p393 = pneg %p196
        %p394 = pneg %p193
        %p395 = pneg %p217
        %p396 = pneg %p214
        %p397 = pneg %p238
        %p398 = pneg %p235
        %p399 = pneg %p259
        %p400 = pneg %p256
        %p401 = pneg %p280
        %p402 = pneg %p277
        %p403 = pneg %p306
        %p404 = pneg %p303
        %s405 = sand.u32 %s293, 1
        %s406 = scalar_lea.sflag [#allocation4], %s405
        %s407 = sand.u32 %s293, 1
        %s408 = scalar_lea.vmem [#allocation3], %s407
        %s409 = smul.u32 16, %s28
        %p410 = scmp.lt.s32.totalorder %s409, 31
        %s411 = scalar_select %p410, %s409, 31
        %s412 = smul.addr %s411, 4
        %s413 = scalar_lea.vmem %s0, %s412
        %s414 = smul.u32 16, %s28
        %v416 = vld [vmem:[%s413] sm:$0xf]
        %v417 = vld [vmem:[%s413 + $0x4] sm:$0xf]
        %v418 = vld [vmem:[%s413 + $0x8] sm:$0xf]
        %v419 = vld [vmem:[%s413 + $0xc] sm:$0xf]
        %v420 = vld [vmem:[%s413 + $0x10] sm:$0xf]
        %v421 = vld [vmem:[%s413 + $0x14] sm:$0xf]
        %v422 = vld [vmem:[%s413 + $0x18] sm:$0xf]
        %v423 = vld [vmem:[%s413 + $0x1c] sm:$0xf]
        %v424 = vld [vmem:[%s413 + $0x20] sm:$0xf]
        %v425 = vld [vmem:[%s413 + $0x24] sm:$0xf]
        %v426 = vld [vmem:[%s413 + $0x28] sm:$0xf]
        %v427 = vld [vmem:[%s413 + $0x2c] sm:$0xf]
        %v428 = vld [vmem:[%s413 + $0x30] sm:$0xf]
        %v429 = vld [vmem:[%s413 + $0x34] sm:$0xf]
        %v430 = vld [vmem:[%s413 + $0x38] sm:$0xf]
        %v431 = vld [vmem:[%s413 + $0x3c] sm:$0xf]
        %v432 = vld [vmem:[%s10] sm:$0x1]
        %v433 = vld [vmem:[%s10 + $0x1] sm:$0x1]
        %v434 = vld [vmem:[%s10 + $0x2] sm:$0x1]
        %v435 = vld [vmem:[%s10 + $0x3] sm:$0x1]
        %v436 = vld [vmem:[%s10 + $0x4] sm:$0x1]
        %v437 = vld [vmem:[%s10 + $0x5] sm:$0x1]
        %v438 = vld [vmem:[%s10 + $0x6] sm:$0x1]
        %v439 = vld [vmem:[%s1] sm:$0xf]
        %v440 = vld [vmem:[%s1 + $0x4] sm:$0xf]
        %v441 = vperm.slane %v432, 0
        %v458 = vunpack.c.l.b16 %v416
        %v459 = vunpack.c.l.b16 %v417
        %v460 = vunpack.c.l.b16 %v418
        %v461 = vunpack.c.l.b16 %v419
        %v462 = vunpack.c.l.b16 %v420
        %v463 = vunpack.c.l.b16 %v421
        %v464 = vunpack.c.l.b16 %v422
        %v465 = vunpack.c.l.b16 %v423
        %v466 = vunpack.c.l.b16 %v424
        %v467 = vunpack.c.l.b16 %v425
        %v468 = vunpack.c.l.b16 %v426
        %v469 = vunpack.c.l.b16 %v427
        %v470 = vunpack.c.l.b16 %v428
        %v471 = vunpack.c.l.b16 %v429
        %v472 = vunpack.c.l.b16 %v430
        %v473 = vunpack.c.l.b16 %v431
        %v474 = vpack.c.b16 %v459, %v458
        %v475 = vpack.c.b16 %v461, %v460
        %v476 = vpack.c.b16 %v463, %v462
        %v477 = vpack.c.b16 %v465, %v464
        %v478 = vpack.c.b16 %v467, %v466
        %v479 = vpack.c.b16 %v469, %v468
        %v480 = vpack.c.b16 %v471, %v470
        %v481 = vpack.c.b16 %v473, %v472
        %v484 = vunpack.c.l.b16 %v439
        %v485 = vunpack.c.l.b16 %v440
        %v486 = vpack.c.b16 %v485, %v484
        %vm488 = vcmask 130048
        %v490 = vsel %vm488, %v474, 0
        %v493 = vsel %vm488, %v475, 0
        %v496 = vsel %vm488, %v476, 0
        %v499 = vsel %vm488, %v477, 0
        %v502 = vsel %vm488, %v478, 0
        %v505 = vsel %vm488, %v479, 0
        %v508 = vsel %vm488, %v480, 0
        %v511 = vsel %vm488, %v481, 0
        %513 = vmatpush.bf16.msra.mxu0 0
        %514 = vmatpush.bf16.msra.mxu0 0
        %515 = vmatpush.bf16.msra.mxu0 0
        %516 = vmatpush.bf16.msra.mxu0 0
        %517 = vmatpush.bf16.msra.mxu0 0
        %518 = vmatpush.bf16.msra.mxu0 0
        %519 = vmatpush.bf16.msra.mxu0 0
        %520 = vmatpush.bf16.msra.mxu0 %v486
        %521 = vmatmul.bf16.gmra.mxu0 %v490
        %v522 = vpop.f32.mrf.mxu0
        %v523 = vadd.f32 %v441, %v522
        %v524 = vpop.f32.mrf.mxu0
        %v525 = vadd.f32 %v441, %v524
        %526 = vmatmul.bf16.gmra.mxu0 %v493
        %v527 = vpop.f32.mrf.mxu0
        %v528 = vadd.f32 %v441, %v527
        %v529 = vpop.f32.mrf.mxu0
        %v530 = vadd.f32 %v441, %v529
        %531 = vmatmul.bf16.gmra.mxu0 %v496
        %v532 = vpop.f32.mrf.mxu0
        %v533 = vadd.f32 %v441, %v532
        %v534 = vpop.f32.mrf.mxu0
        %v535 = vadd.f32 %v441, %v534
        %536 = vmatmul.bf16.gmra.mxu0 %v499
        %v537 = vpop.f32.mrf.mxu0
        %v538 = vadd.f32 %v441, %v537
        %v539 = vpop.f32.mrf.mxu0
        %v540 = vadd.f32 %v441, %v539
        %541 = vmatmul.bf16.gmra.mxu0 %v502
        %v542 = vpop.f32.mrf.mxu0
        %v543 = vadd.f32 %v441, %v542
        %v544 = vpop.f32.mrf.mxu0
        %v545 = vadd.f32 %v441, %v544
        %546 = vmatmul.bf16.gmra.mxu0 %v505
        %v547 = vpop.f32.mrf.mxu0
        %v548 = vadd.f32 %v441, %v547
        %v549 = vpop.f32.mrf.mxu0
        %v550 = vadd.f32 %v441, %v549
        %551 = vmatmul.bf16.gmra.mxu0 %v508
        %v552 = vpop.f32.mrf.mxu0
        %v553 = vadd.f32 %v441, %v552
        %v554 = vpop.f32.mrf.mxu0
        %v555 = vadd.f32 %v441, %v554
        %556 = vmatmul.bf16.gmra.mxu0 %v511
        %v557 = vpop.f32.mrf.mxu0
        %v558 = vadd.f32 %v441, %v557
        %v559 = vpop.f32.mrf.mxu0
        %v560 = vadd.f32 %v441, %v559
        %561 = vdwg.mxu0
        %v562 = vmax.f32 %v523, 0.0
        %v563 = vmax.f32 %v525, 0.0
        %v564 = vmax.f32 %v528, 0.0
        %v565 = vmax.f32 %v530, 0.0
        %v566 = vmax.f32 %v533, 0.0
        %v567 = vmax.f32 %v535, 0.0
        %v568 = vmax.f32 %v538, 0.0
        %v569 = vmax.f32 %v540, 0.0
        %v570 = vmax.f32 %v543, 0.0
        %v571 = vmax.f32 %v545, 0.0
        %v572 = vmax.f32 %v548, 0.0
        %v573 = vmax.f32 %v550, 0.0
        %v574 = vmax.f32 %v553, 0.0
        %v575 = vmax.f32 %v555, 0.0
        %v576 = vmax.f32 %v558, 0.0
        %v577 = vmax.f32 %v560, 0.0
        %v578 = vpack.c.bf16 %v563, %v562
        %v579 = vpack.c.bf16 %v565, %v564
        %v580 = vpack.c.bf16 %v567, %v566
        %v581 = vpack.c.bf16 %v569, %v568
        %v582 = vpack.c.bf16 %v571, %v570
        %v583 = vpack.c.bf16 %v573, %v572
        %v584 = vpack.c.bf16 %v575, %v574
        %v585 = vpack.c.bf16 %v577, %v576
        %v586 = vld [vmem:[%s2] sm:$0xf]
        %v587 = vld [vmem:[%s2 + $0x4] sm:$0xf]
        %v588 = vld [vmem:[%s2 + $0x8] sm:$0xf]
        %v589 = vld [vmem:[%s2 + $0xc] sm:$0xf]
        %v590 = vperm.slane %v433, 0
        %v595 = vunpack.c.l.b16 %v586
        %v596 = vunpack.c.l.b16 %v587
        %v597 = vunpack.c.l.b16 %v588
        %v598 = vunpack.c.l.b16 %v589
        %v599 = vpack.c.b16 %v596, %v595
        %v600 = vpack.c.b16 %v598, %v597
        %vm603 = vcmask 261120
        %v605 = vsel %vm603, %v578, 0
        %v608 = vsel %vm603, %v579, 0
        %v611 = vsel %vm603, %v580, 0
        %v614 = vsel %vm603, %v581, 0
        %v617 = vsel %vm603, %v582, 0
        %v620 = vsel %vm603, %v583, 0
        %v623 = vsel %vm603, %v584, 0
        %v626 = vsel %vm603, %v585, 0
        %628 = vmatpush.bf16.msra.mxu0 0
        %629 = vmatpush.bf16.msra.mxu0 0
        %630 = vmatpush.bf16.msra.mxu0 0
        %631 = vmatpush.bf16.msra.mxu0 0
        %632 = vmatpush.bf16.msra.mxu0 0
        %633 = vmatpush.bf16.msra.mxu0 0
        %634 = vmatpush.bf16.msra.mxu0 %v600
        %635 = vmatpush.bf16.msra.mxu0 %v599
        %636 = vmatmul.bf16.gmra.mxu0 %v605
        %v637 = vpop.f32.mrf.mxu0
        %v638 = vadd.f32 %v590, %v637
        %v639 = vpop.f32.mrf.mxu0
        %v640 = vadd.f32 %v590, %v639
        %641 = vmatmul.bf16.gmra.mxu0 %v608
        %v642 = vpop.f32.mrf.mxu0
        %v643 = vadd.f32 %v590, %v642
        %v644 = vpop.f32.mrf.mxu0
        %v645 = vadd.f32 %v590, %v644
        %646 = vmatmul.bf16.gmra.mxu0 %v611
        %v647 = vpop.f32.mrf.mxu0
        %v648 = vadd.f32 %v590, %v647
        %v649 = vpop.f32.mrf.mxu0
        %v650 = vadd.f32 %v590, %v649
        %651 = vmatmul.bf16.gmra.mxu0 %v614
        %v652 = vpop.f32.mrf.mxu0
        %v653 = vadd.f32 %v590, %v652
        %v654 = vpop.f32.mrf.mxu0
        %v655 = vadd.f32 %v590, %v654
        %656 = vmatmul.bf16.gmra.mxu0 %v617
        %v657 = vpop.f32.mrf.mxu0
        %v658 = vadd.f32 %v590, %v657
        %v659 = vpop.f32.mrf.mxu0
        %v660 = vadd.f32 %v590, %v659
        %661 = vmatmul.bf16.gmra.mxu0 %v620
        %v662 = vpop.f32.mrf.mxu0
        %v663 = vadd.f32 %v590, %v662
        %v664 = vpop.f32.mrf.mxu0
        %v665 = vadd.f32 %v590, %v664
        %666 = vmatmul.bf16.gmra.mxu0 %v623
        %v667 = vpop.f32.mrf.mxu0
        %v668 = vadd.f32 %v590, %v667
        %v669 = vpop.f32.mrf.mxu0
        %v670 = vadd.f32 %v590, %v669
        %671 = vmatmul.bf16.gmra.mxu0 %v626
        %v672 = vpop.f32.mrf.mxu0
        %v673 = vadd.f32 %v590, %v672
        %v674 = vpop.f32.mrf.mxu0
        %v675 = vadd.f32 %v590, %v674
        %676 = vdwg.mxu0
        %v677 = vmax.f32 %v638, 0.0
        %v678 = vmax.f32 %v640, 0.0
        %v679 = vmax.f32 %v643, 0.0
        %v680 = vmax.f32 %v645, 0.0
        %v681 = vmax.f32 %v648, 0.0
        %v682 = vmax.f32 %v650, 0.0
        %v683 = vmax.f32 %v653, 0.0
        %v684 = vmax.f32 %v655, 0.0
        %v685 = vmax.f32 %v658, 0.0
        %v686 = vmax.f32 %v660, 0.0
        %v687 = vmax.f32 %v663, 0.0
        %v688 = vmax.f32 %v665, 0.0
        %v689 = vmax.f32 %v668, 0.0
        %v690 = vmax.f32 %v670, 0.0
        %v691 = vmax.f32 %v673, 0.0
        %v692 = vmax.f32 %v675, 0.0
        %v693 = vpack.c.bf16 %v678, %v677
        %v694 = vpack.c.bf16 %v680, %v679
        %v695 = vpack.c.bf16 %v682, %v681
        %v696 = vpack.c.bf16 %v684, %v683
        %v697 = vpack.c.bf16 %v686, %v685
        %v698 = vpack.c.bf16 %v688, %v687
        %v699 = vpack.c.bf16 %v690, %v689
        %v700 = vpack.c.bf16 %v692, %v691
        %v701 = vld [vmem:[%s3] sm:$0xf]
        %v702 = vld [vmem:[%s3 + $0x4] sm:$0xf]
        %v703 = vld [vmem:[%s3 + $0x8] sm:$0xf]
        %v704 = vld [vmem:[%s3 + $0xc] sm:$0xf]
        %v705 = vperm.slane %v434, 0
        %v710 = vunpack.c.l.b16 %v701
        %v711 = vunpack.c.l.b16 %v702
        %v712 = vunpack.c.l.b16 %v703
        %v713 = vunpack.c.l.b16 %v704
        %v714 = vpack.c.b16 %v711, %v710
        %v715 = vpack.c.b16 %v713, %v712
        %v719 = vsel %vm603, %v693, 0
        %v722 = vsel %vm603, %v694, 0
        %v725 = vsel %vm603, %v695, 0
        %v728 = vsel %vm603, %v696, 0
        %v731 = vsel %vm603, %v697, 0
        %v734 = vsel %vm603, %v698, 0
        %v737 = vsel %vm603, %v699, 0
        %v740 = vsel %vm603, %v700, 0
        %742 = vmatpush.bf16.msra.mxu0 0
        %743 = vmatpush.bf16.msra.mxu0 0
        %744 = vmatpush.bf16.msra.mxu0 0
        %745 = vmatpush.bf16.msra.mxu0 0
        %746 = vmatpush.bf16.msra.mxu0 0
        %747 = vmatpush.bf16.msra.mxu0 0
        %748 = vmatpush.bf16.msra.mxu0 %v715
        %749 = vmatpush.bf16.msra.mxu0 %v714
        %750 = vmatmul.bf16.gmra.mxu0 %v719
        %v751 = vpop.f32.mrf.mxu0
        %v752 = vadd.f32 %v705, %v751
        %v753 = vpop.f32.mrf.mxu0
        %v754 = vadd.f32 %v705, %v753
        %755 = vmatmul.bf16.gmra.mxu0 %v722
        %v756 = vpop.f32.mrf.mxu0
        %v757 = vadd.f32 %v705, %v756
        %v758 = vpop.f32.mrf.mxu0
        %v759 = vadd.f32 %v705, %v758
        %760 = vmatmul.bf16.gmra.mxu0 %v725
        %v761 = vpop.f32.mrf.mxu0
        %v762 = vadd.f32 %v705, %v761
        %v763 = vpop.f32.mrf.mxu0
        %v764 = vadd.f32 %v705, %v763
        %765 = vmatmul.bf16.gmra.mxu0 %v728
        %v766 = vpop.f32.mrf.mxu0
        %v767 = vadd.f32 %v705, %v766
        %v768 = vpop.f32.mrf.mxu0
        %v769 = vadd.f32 %v705, %v768
        %770 = vmatmul.bf16.gmra.mxu0 %v731
        %v771 = vpop.f32.mrf.mxu0
        %v772 = vadd.f32 %v705, %v771
        %v773 = vpop.f32.mrf.mxu0
        %v774 = vadd.f32 %v705, %v773
        %775 = vmatmul.bf16.gmra.mxu0 %v734
        %v776 = vpop.f32.mrf.mxu0
        %v777 = vadd.f32 %v705, %v776
        %v778 = vpop.f32.mrf.mxu0
        %v779 = vadd.f32 %v705, %v778
        %780 = vmatmul.bf16.gmra.mxu0 %v737
        %v781 = vpop.f32.mrf.mxu0
        %v782 = vadd.f32 %v705, %v781
        %v783 = vpop.f32.mrf.mxu0
        %v784 = vadd.f32 %v705, %v783
        %785 = vmatmul.bf16.gmra.mxu0 %v740
        %v786 = vpop.f32.mrf.mxu0
        %v787 = vadd.f32 %v705, %v786
        %v788 = vpop.f32.mrf.mxu0
        %v789 = vadd.f32 %v705, %v788
        %790 = vdwg.mxu0
        %v791 = vmax.f32 %v752, 0.0
        %v792 = vmax.f32 %v754, 0.0
        %v793 = vmax.f32 %v757, 0.0
        %v794 = vmax.f32 %v759, 0.0
        %v795 = vmax.f32 %v762, 0.0
        %v796 = vmax.f32 %v764, 0.0
        %v797 = vmax.f32 %v767, 0.0
        %v798 = vmax.f32 %v769, 0.0
        %v799 = vmax.f32 %v772, 0.0
        %v800 = vmax.f32 %v774, 0.0
        %v801 = vmax.f32 %v777, 0.0
        %v802 = vmax.f32 %v779, 0.0
        %v803 = vmax.f32 %v782, 0.0
        %v804 = vmax.f32 %v784, 0.0
        %v805 = vmax.f32 %v787, 0.0
        %v806 = vmax.f32 %v789, 0.0
        %v807 = vpack.c.bf16 %v792, %v791
        %v808 = vpack.c.bf16 %v794, %v793
        %v809 = vpack.c.bf16 %v796, %v795
        %v810 = vpack.c.bf16 %v798, %v797
        %v811 = vpack.c.bf16 %v800, %v799
        %v812 = vpack.c.bf16 %v802, %v801
        %v813 = vpack.c.bf16 %v804, %v803
        %v814 = vpack.c.bf16 %v806, %v805
        %v815 = vld [vmem:[%s4] sm:$0xf]
        %v816 = vld [vmem:[%s4 + $0x4] sm:$0xf]
        %v817 = vld [vmem:[%s4 + $0x8] sm:$0xf]
        %v818 = vld [vmem:[%s4 + $0xc] sm:$0xf]
        %v819 = vperm.slane %v435, 0
        %v824 = vunpack.c.l.b16 %v815
        %v825 = vunpack.c.l.b16 %v816
        %v826 = vunpack.c.l.b16 %v817
        %v827 = vunpack.c.l.b16 %v818
        %v828 = vpack.c.b16 %v825, %v824
        %v829 = vpack.c.b16 %v827, %v826
        %v833 = vsel %vm603, %v807, 0
        %v836 = vsel %vm603, %v808, 0
        %v839 = vsel %vm603, %v809, 0
        %v842 = vsel %vm603, %v810, 0
        %v845 = vsel %vm603, %v811, 0
        %v848 = vsel %vm603, %v812, 0
        %v851 = vsel %vm603, %v813, 0
        %v854 = vsel %vm603, %v814, 0
        %856 = vmatpush.bf16.msra.mxu0 0
        %857 = vmatpush.bf16.msra.mxu0 0
        %858 = vmatpush.bf16.msra.mxu0 0
        %859 = vmatpush.bf16.msra.mxu0 0
        %860 = vmatpush.bf16.msra.mxu0 0
        %861 = vmatpush.bf16.msra.mxu0 0
        %862 = vmatpush.bf16.msra.mxu0 %v829
        %863 = vmatpush.bf16.msra.mxu0 %v828
        %864 = vmatmul.bf16.gmra.mxu0 %v833
        %v865 = vpop.f32.mrf.mxu0
        %v866 = vadd.f32 %v819, %v865
        %v867 = vpop.f32.mrf.mxu0
        %v868 = vadd.f32 %v819, %v867
        %869 = vmatmul.bf16.gmra.mxu0 %v836
        %v870 = vpop.f32.mrf.mxu0
        %v871 = vadd.f32 %v819, %v870
        %v872 = vpop.f32.mrf.mxu0
        %v873 = vadd.f32 %v819, %v872
        %874 = vmatmul.bf16.gmra.mxu0 %v839
        %v875 = vpop.f32.mrf.mxu0
        %v876 = vadd.f32 %v819, %v875
        %v877 = vpop.f32.mrf.mxu0
        %v878 = vadd.f32 %v819, %v877
        %879 = vmatmul.bf16.gmra.mxu0 %v842
        %v880 = vpop.f32.mrf.mxu0
        %v881 = vadd.f32 %v819, %v880
        %v882 = vpop.f32.mrf.mxu0
        %v883 = vadd.f32 %v819, %v882
        %884 = vmatmul.bf16.gmra.mxu0 %v845
        %v885 = vpop.f32.mrf.mxu0
        %v886 = vadd.f32 %v819, %v885
        %v887 = vpop.f32.mrf.mxu0
        %v888 = vadd.f32 %v819, %v887
        %889 = vmatmul.bf16.gmra.mxu0 %v848
        %v890 = vpop.f32.mrf.mxu0
        %v891 = vadd.f32 %v819, %v890
        %v892 = vpop.f32.mrf.mxu0
        %v893 = vadd.f32 %v819, %v892
        %894 = vmatmul.bf16.gmra.mxu0 %v851
        %v895 = vpop.f32.mrf.mxu0
        %v896 = vadd.f32 %v819, %v895
        %v897 = vpop.f32.mrf.mxu0
        %v898 = vadd.f32 %v819, %v897
        %899 = vmatmul.bf16.gmra.mxu0 %v854
        %v900 = vpop.f32.mrf.mxu0
        %v901 = vadd.f32 %v819, %v900
        %v902 = vpop.f32.mrf.mxu0
        %v903 = vadd.f32 %v819, %v902
        %904 = vdwg.mxu0
        %v905 = vmax.f32 %v866, 0.0
        %v906 = vmax.f32 %v868, 0.0
        %v907 = vmax.f32 %v871, 0.0
        %v908 = vmax.f32 %v873, 0.0
        %v909 = vmax.f32 %v876, 0.0
        %v910 = vmax.f32 %v878, 0.0
        %v911 = vmax.f32 %v881, 0.0
        %v912 = vmax.f32 %v883, 0.0
        %v913 = vmax.f32 %v886, 0.0
        %v914 = vmax.f32 %v888, 0.0
        %v915 = vmax.f32 %v891, 0.0
        %v916 = vmax.f32 %v893, 0.0
        %v917 = vmax.f32 %v896, 0.0
        %v918 = vmax.f32 %v898, 0.0
        %v919 = vmax.f32 %v901, 0.0
        %v920 = vmax.f32 %v903, 0.0
        %v921 = vunpack.c.l.bf16 %v416
        %v922 = vunpack.c.l.bf16 %v417
        %v923 = vunpack.c.l.bf16 %v418
        %v924 = vunpack.c.l.bf16 %v419
        %v925 = vunpack.c.l.bf16 %v420
        %v926 = vunpack.c.l.bf16 %v421
        %v927 = vunpack.c.l.bf16 %v422
        %v928 = vunpack.c.l.bf16 %v423
        %v929 = vunpack.c.l.bf16 %v424
        %v930 = vunpack.c.l.bf16 %v425
        %v931 = vunpack.c.l.bf16 %v426
        %v932 = vunpack.c.l.bf16 %v427
        %v933 = vunpack.c.l.bf16 %v428
        %v934 = vunpack.c.l.bf16 %v429
        %v935 = vunpack.c.l.bf16 %v430
        %v936 = vunpack.c.l.bf16 %v431
        %v937 = vld [vmem:[%s6] sm:$0x7]
        %939 = vset.pattern.permute.xlu0 13
        %940 = vperm.xlu0 %939, %v921
        %v941 = vpop.permute.xlu0 %940
        %944 = vset.pattern.permute.xlu0 13
        %945 = vperm.xlu0 %944, %v922
        %v946 = vpop.permute.xlu0 %945
        %949 = vset.pattern.permute.xlu0 13
        %950 = vperm.xlu0 %949, %v923
        %v951 = vpop.permute.xlu0 %950
        %954 = vset.pattern.permute.xlu0 13
        %955 = vperm.xlu0 %954, %v924
        %v956 = vpop.permute.xlu0 %955
        %959 = vset.pattern.permute.xlu0 13
        %960 = vperm.xlu0 %959, %v925
        %v961 = vpop.permute.xlu0 %960
        %964 = vset.pattern.permute.xlu0 13
        %965 = vperm.xlu0 %964, %v926
        %v966 = vpop.permute.xlu0 %965
        %969 = vset.pattern.permute.xlu0 13
        %970 = vperm.xlu0 %969, %v927
        %v971 = vpop.permute.xlu0 %970
        %974 = vset.pattern.permute.xlu0 13
        %975 = vperm.xlu0 %974, %v928
        %v976 = vpop.permute.xlu0 %975
        %979 = vset.pattern.permute.xlu0 13
        %980 = vperm.xlu0 %979, %v929
        %v981 = vpop.permute.xlu0 %980
        %984 = vset.pattern.permute.xlu0 13
        %985 = vperm.xlu0 %984, %v930
        %v986 = vpop.permute.xlu0 %985
        %989 = vset.pattern.permute.xlu0 13
        %990 = vperm.xlu0 %989, %v931
        %v991 = vpop.permute.xlu0 %990
        %994 = vset.pattern.permute.xlu0 13
        %995 = vperm.xlu0 %994, %v932
        %v996 = vpop.permute.xlu0 %995
        %999 = vset.pattern.permute.xlu0 13
        %1000 = vperm.xlu0 %999, %v933
        %v1001 = vpop.permute.xlu0 %1000
        %1004 = vset.pattern.permute.xlu0 13
        %1005 = vperm.xlu0 %1004, %v934
        %v1006 = vpop.permute.xlu0 %1005
        %1009 = vset.pattern.permute.xlu0 13
        %1010 = vperm.xlu0 %1009, %v935
        %v1011 = vpop.permute.xlu0 %1010
        %1014 = vset.pattern.permute.xlu0 13
        %1015 = vperm.xlu0 %1014, %v936
        %v1016 = vpop.permute.xlu0 %1015
        %v1018 = vperm.slane %v937, 0
        %v1019 = vmul.f32 %v941, %v1018
        %v1020 = vmul.f32 %v946, %v1018
        %v1021 = vmul.f32 %v951, %v1018
        %v1022 = vmul.f32 %v956, %v1018
        %v1023 = vmul.f32 %v961, %v1018
        %v1024 = vmul.f32 %v966, %v1018
        %v1025 = vmul.f32 %v971, %v1018
        %v1026 = vmul.f32 %v976, %v1018
        %v1027 = vmul.f32 %v981, %v1018
        %v1028 = vmul.f32 %v986, %v1018
        %v1029 = vmul.f32 %v991, %v1018
        %v1030 = vmul.f32 %v996, %v1018
        %v1031 = vmul.f32 %v1001, %v1018
        %v1032 = vmul.f32 %v1006, %v1018
        %v1033 = vmul.f32 %v1011, %v1018
        %v1034 = vmul.f32 %v1016, %v1018
        %1035 = vset.pattern.permute.xlu0 14
        %1036 = vperm.xlu0 %1035, %v921
        %v1037 = vpop.permute.xlu0 %1036
        %1039 = vset.pattern.permute.xlu0 14
        %1040 = vperm.xlu0 %1039, %v922
        %v1041 = vpop.permute.xlu0 %1040
        %1043 = vset.pattern.permute.xlu0 14
        %1044 = vperm.xlu0 %1043, %v923
        %v1045 = vpop.permute.xlu0 %1044
        %1047 = vset.pattern.permute.xlu0 14
        %1048 = vperm.xlu0 %1047, %v924
        %v1049 = vpop.permute.xlu0 %1048
        %1051 = vset.pattern.permute.xlu0 14
        %1052 = vperm.xlu0 %1051, %v925
        %v1053 = vpop.permute.xlu0 %1052
        %1055 = vset.pattern.permute.xlu0 14
        %1056 = vperm.xlu0 %1055, %v926
        %v1057 = vpop.permute.xlu0 %1056
        %1059 = vset.pattern.permute.xlu0 14
        %1060 = vperm.xlu0 %1059, %v927
        %v1061 = vpop.permute.xlu0 %1060
        %1063 = vset.pattern.permute.xlu0 14
        %1064 = vperm.xlu0 %1063, %v928
        %v1065 = vpop.permute.xlu0 %1064
        %1067 = vset.pattern.permute.xlu0 14
        %1068 = vperm.xlu0 %1067, %v929
        %v1069 = vpop.permute.xlu0 %1068
        %1071 = vset.pattern.permute.xlu0 14
        %1072 = vperm.xlu0 %1071, %v930
        %v1073 = vpop.permute.xlu0 %1072
        %1075 = vset.pattern.permute.xlu0 14
        %1076 = vperm.xlu0 %1075, %v931
        %v1077 = vpop.permute.xlu0 %1076
        %1079 = vset.pattern.permute.xlu0 14
        %1080 = vperm.xlu0 %1079, %v932
        %v1081 = vpop.permute.xlu0 %1080
        %1083 = vset.pattern.permute.xlu0 14
        %1084 = vperm.xlu0 %1083, %v933
        %v1085 = vpop.permute.xlu0 %1084
        %1087 = vset.pattern.permute.xlu0 14
        %1088 = vperm.xlu0 %1087, %v934
        %v1089 = vpop.permute.xlu0 %1088
        %1091 = vset.pattern.permute.xlu0 14
        %1092 = vperm.xlu0 %1091, %v935
        %v1093 = vpop.permute.xlu0 %1092
        %1095 = vset.pattern.permute.xlu0 14
        %1096 = vperm.xlu0 %1095, %v936
        %v1097 = vpop.permute.xlu0 %1096
        %v1099 = vperm.slane %v937, 1
        %v1100 = vmul.f32 %v1037, %v1099
        %v1101 = vmul.f32 %v1041, %v1099
        %v1102 = vmul.f32 %v1045, %v1099
        %v1103 = vmul.f32 %v1049, %v1099
        %v1104 = vmul.f32 %v1053, %v1099
        %v1105 = vmul.f32 %v1057, %v1099
        %v1106 = vmul.f32 %v1061, %v1099
        %v1107 = vmul.f32 %v1065, %v1099
        %v1108 = vmul.f32 %v1069, %v1099
        %v1109 = vmul.f32 %v1073, %v1099
        %v1110 = vmul.f32 %v1077, %v1099
        %v1111 = vmul.f32 %v1081, %v1099
        %v1112 = vmul.f32 %v1085, %v1099
        %v1113 = vmul.f32 %v1089, %v1099
        %v1114 = vmul.f32 %v1093, %v1099
        %v1115 = vmul.f32 %v1097, %v1099
        %v1116 = vadd.f32 %v1019, %v1100
        %v1117 = vadd.f32 %v1020, %v1101
        %v1118 = vadd.f32 %v1021, %v1102
        %v1119 = vadd.f32 %v1022, %v1103
        %v1120 = vadd.f32 %v1023, %v1104
        %v1121 = vadd.f32 %v1024, %v1105
        %v1122 = vadd.f32 %v1025, %v1106
        %v1123 = vadd.f32 %v1026, %v1107
        %v1124 = vadd.f32 %v1027, %v1108
        %v1125 = vadd.f32 %v1028, %v1109
        %v1126 = vadd.f32 %v1029, %v1110
        %v1127 = vadd.f32 %v1030, %v1111
        %v1128 = vadd.f32 %v1031, %v1112
        %v1129 = vadd.f32 %v1032, %v1113
        %v1130 = vadd.f32 %v1033, %v1114
        %v1131 = vadd.f32 %v1034, %v1115
        %1132 = vset.pattern.permute.xlu0 15
        %1133 = vperm.xlu0 %1132, %v921
        %v1134 = vpop.permute.xlu0 %1133
        %1136 = vset.pattern.permute.xlu0 15
        %1137 = vperm.xlu0 %1136, %v922
        %v1138 = vpop.permute.xlu0 %1137
        %1140 = vset.pattern.permute.xlu0 15
        %1141 = vperm.xlu0 %1140, %v923
        %v1142 = vpop.permute.xlu0 %1141
        %1144 = vset.pattern.permute.xlu0 15
        %1145 = vperm.xlu0 %1144, %v924
        %v1146 = vpop.permute.xlu0 %1145
        %1148 = vset.pattern.permute.xlu0 15
        %1149 = vperm.xlu0 %1148, %v925
        %v1150 = vpop.permute.xlu0 %1149
        %1152 = vset.pattern.permute.xlu0 15
        %1153 = vperm.xlu0 %1152, %v926
        %v1154 = vpop.permute.xlu0 %1153
        %1156 = vset.pattern.permute.xlu0 15
        %1157 = vperm.xlu0 %1156, %v927
        %v1158 = vpop.permute.xlu0 %1157
        %1160 = vset.pattern.permute.xlu0 15
        %1161 = vperm.xlu0 %1160, %v928
        %v1162 = vpop.permute.xlu0 %1161
        %1164 = vset.pattern.permute.xlu0 15
        %1165 = vperm.xlu0 %1164, %v929
        %v1166 = vpop.permute.xlu0 %1165
        %1168 = vset.pattern.permute.xlu0 15
        %1169 = vperm.xlu0 %1168, %v930
        %v1170 = vpop.permute.xlu0 %1169
        %1172 = vset.pattern.permute.xlu0 15
        %1173 = vperm.xlu0 %1172, %v931
        %v1174 = vpop.permute.xlu0 %1173
        %1176 = vset.pattern.permute.xlu0 15
        %1177 = vperm.xlu0 %1176, %v932
        %v1178 = vpop.permute.xlu0 %1177
        %1180 = vset.pattern.permute.xlu0 15
        %1181 = vperm.xlu0 %1180, %v933
        %v1182 = vpop.permute.xlu0 %1181
        %1184 = vset.pattern.permute.xlu0 15
        %1185 = vperm.xlu0 %1184, %v934
        %v1186 = vpop.permute.xlu0 %1185
        %1188 = vset.pattern.permute.xlu0 15
        %1189 = vperm.xlu0 %1188, %v935
        %v1190 = vpop.permute.xlu0 %1189
        %1192 = vset.pattern.permute.xlu0 15
        %1193 = vperm.xlu0 %1192, %v936
        %v1194 = vpop.permute.xlu0 %1193
        %v1196 = vperm.slane %v937, 2
        %v1197 = vmul.f32 %v1134, %v1196
        %v1198 = vmul.f32 %v1138, %v1196
        %v1199 = vmul.f32 %v1142, %v1196
        %v1200 = vmul.f32 %v1146, %v1196
        %v1201 = vmul.f32 %v1150, %v1196
        %v1202 = vmul.f32 %v1154, %v1196
        %v1203 = vmul.f32 %v1158, %v1196
        %v1204 = vmul.f32 %v1162, %v1196
        %v1205 = vmul.f32 %v1166, %v1196
        %v1206 = vmul.f32 %v1170, %v1196
        %v1207 = vmul.f32 %v1174, %v1196
        %v1208 = vmul.f32 %v1178, %v1196
        %v1209 = vmul.f32 %v1182, %v1196
        %v1210 = vmul.f32 %v1186, %v1196
        %v1211 = vmul.f32 %v1190, %v1196
        %v1212 = vmul.f32 %v1194, %v1196
        %v1213 = vadd.f32 %v1116, %v1197
        %v1214 = vadd.f32 %v1117, %v1198
        %v1215 = vadd.f32 %v1118, %v1199
        %v1216 = vadd.f32 %v1119, %v1200
        %v1217 = vadd.f32 %v1120, %v1201
        %v1218 = vadd.f32 %v1121, %v1202
        %v1219 = vadd.f32 %v1122, %v1203
        %v1220 = vadd.f32 %v1123, %v1204
        %v1221 = vadd.f32 %v1124, %v1205
        %v1222 = vadd.f32 %v1125, %v1206
        %v1223 = vadd.f32 %v1126, %v1207
        %v1224 = vadd.f32 %v1127, %v1208
        %v1225 = vadd.f32 %v1128, %v1209
        %v1226 = vadd.f32 %v1129, %v1210
        %v1227 = vadd.f32 %v1130, %v1211
        %v1228 = vadd.f32 %v1131, %v1212
        %v1229 = vpack.c.bf16 %v906, %v905
        %v1230 = vpack.c.bf16 %v908, %v907
        %v1231 = vpack.c.bf16 %v910, %v909
        %v1232 = vpack.c.bf16 %v912, %v911
        %v1233 = vpack.c.bf16 %v914, %v913
        %v1234 = vpack.c.bf16 %v916, %v915
        %v1235 = vpack.c.bf16 %v918, %v917
        %v1236 = vpack.c.bf16 %v920, %v919
        %v1237 = vld [vmem:[%s5] sm:$0xf]
        %v1238 = vld [vmem:[%s5 + $0x4] sm:$0xf]
        %v1239 = vld [vmem:[%s5 + $0x8] sm:$0xf]
        %v1240 = vld [vmem:[%s5 + $0xc] sm:$0xf]
        %v1245 = vunpack.c.l.b16 %v1237
        %v1246 = vunpack.c.l.b16 %v1238
        %v1247 = vunpack.c.l.b16 %v1239
        %v1248 = vunpack.c.l.b16 %v1240
        %v1249 = vpack.c.b16 %v1246, %v1245
        %v1250 = vpack.c.b16 %v1248, %v1247
        %v1254 = vsel %vm603, %v1229, 0
        %v1257 = vsel %vm603, %v1230, 0
        %v1260 = vsel %vm603, %v1231, 0
        %v1263 = vsel %vm603, %v1232, 0
        %v1266 = vsel %vm603, %v1233, 0
        %v1269 = vsel %vm603, %v1234, 0
        %v1272 = vsel %vm603, %v1235, 0
        %v1275 = vsel %vm603, %v1236, 0
        %1277 = vmatpush.bf16.msra.mxu0 0
        %1278 = vmatpush.bf16.msra.mxu0 0
        %1279 = vmatpush.bf16.msra.mxu0 0
        %1280 = vmatpush.bf16.msra.mxu0 0
        %1281 = vmatpush.bf16.msra.mxu0 0
        %1282 = vmatpush.bf16.msra.mxu0 0
        %1283 = vmatpush.bf16.msra.mxu0 %v1250
        %1284 = vmatpush.bf16.msra.mxu0 %v1249
        %1285 = vmatmul.bf16.gmra.mxu0 %v1254
        %v1286 = vpop.f32.mrf.mxu0
        %v1287 = vadd.f32 %v1213, %v1286
        %v1288 = vpop.f32.mrf.mxu0
        %v1289 = vadd.f32 %v1214, %v1288
        %1290 = vmatmul.bf16.gmra.mxu0 %v1257
        %v1291 = vpop.f32.mrf.mxu0
        %v1292 = vadd.f32 %v1215, %v1291
        %v1293 = vpop.f32.mrf.mxu0
        %v1294 = vadd.f32 %v1216, %v1293
        %1295 = vmatmul.bf16.gmra.mxu0 %v1260
        %v1296 = vpop.f32.mrf.mxu0
        %v1297 = vadd.f32 %v1217, %v1296
        %v1298 = vpop.f32.mrf.mxu0
        %v1299 = vadd.f32 %v1218, %v1298
        %1300 = vmatmul.bf16.gmra.mxu0 %v1263
        %v1301 = vpop.f32.mrf.mxu0
        %v1302 = vadd.f32 %v1219, %v1301
        %v1303 = vpop.f32.mrf.mxu0
        %v1304 = vadd.f32 %v1220, %v1303
        %1305 = vmatmul.bf16.gmra.mxu0 %v1266
        %v1306 = vpop.f32.mrf.mxu0
        %v1307 = vadd.f32 %v1221, %v1306
        %v1308 = vpop.f32.mrf.mxu0
        %v1309 = vadd.f32 %v1222, %v1308
        %1310 = vmatmul.bf16.gmra.mxu0 %v1269
        %v1311 = vpop.f32.mrf.mxu0
        %v1312 = vadd.f32 %v1223, %v1311
        %v1313 = vpop.f32.mrf.mxu0
        %v1314 = vadd.f32 %v1224, %v1313
        %1315 = vmatmul.bf16.gmra.mxu0 %v1272
        %v1316 = vpop.f32.mrf.mxu0
        %v1317 = vadd.f32 %v1225, %v1316
        %v1318 = vpop.f32.mrf.mxu0
        %v1319 = vadd.f32 %v1226, %v1318
        %1320 = vmatmul.bf16.gmra.mxu0 %v1275
        %v1321 = vpop.f32.mrf.mxu0
        %v1322 = vadd.f32 %v1227, %v1321
        %v1323 = vpop.f32.mrf.mxu0
        %v1324 = vadd.f32 %v1228, %v1323
        %1325 = vdwg.mxu0
        %v1326 = vperm.slane %v436, 0
        %v1327 = vadd.f32 %v1287, %v1326
        %v1328 = vadd.f32 %v1289, %v1326
        %v1329 = vadd.f32 %v1292, %v1326
        %v1330 = vadd.f32 %v1294, %v1326
        %v1331 = vadd.f32 %v1297, %v1326
        %v1332 = vadd.f32 %v1299, %v1326
        %v1333 = vadd.f32 %v1302, %v1326
        %v1334 = vadd.f32 %v1304, %v1326
        %v1335 = vadd.f32 %v1307, %v1326
        %v1336 = vadd.f32 %v1309, %v1326
        %v1337 = vadd.f32 %v1312, %v1326
        %v1338 = vadd.f32 %v1314, %v1326
        %v1339 = vadd.f32 %v1317, %v1326
        %v1340 = vadd.f32 %v1319, %v1326
        %v1341 = vadd.f32 %v1322, %v1326
        %v1342 = vadd.f32 %v1324, %v1326
        %v1343 = vmax.f32 %v1327, 0.0
        %v1344 = vmax.f32 %v1328, 0.0
        %v1345 = vmax.f32 %v1329, 0.0
        %v1346 = vmax.f32 %v1330, 0.0
        %v1347 = vmax.f32 %v1331, 0.0
        %v1348 = vmax.f32 %v1332, 0.0
        %v1349 = vmax.f32 %v1333, 0.0
        %v1350 = vmax.f32 %v1334, 0.0
        %v1351 = vmax.f32 %v1335, 0.0
        %v1352 = vmax.f32 %v1336, 0.0
        %v1353 = vmax.f32 %v1337, 0.0
        %v1354 = vmax.f32 %v1338, 0.0
        %v1355 = vmax.f32 %v1339, 0.0
        %v1356 = vmax.f32 %v1340, 0.0
        %v1357 = vmax.f32 %v1341, 0.0
        %v1358 = vmax.f32 %v1342, 0.0
        %v1359 = vpack.c.bf16 %v1344, %v1343
        %v1360 = vpack.c.bf16 %v1346, %v1345
        %v1361 = vpack.c.bf16 %v1348, %v1347
        %v1362 = vpack.c.bf16 %v1350, %v1349
        %v1363 = vpack.c.bf16 %v1352, %v1351
        %v1364 = vpack.c.bf16 %v1354, %v1353
        %v1365 = vpack.c.bf16 %v1356, %v1355
        %v1366 = vpack.c.bf16 %v1358, %v1357
        %v1367 = vld [vmem:[%s7] sm:$0xf]
        %v1368 = vld [vmem:[%s7 + $0x4] sm:$0xf]
        %v1369 = vld [vmem:[%s7 + $0x8] sm:$0xf]
        %v1370 = vld [vmem:[%s7 + $0xc] sm:$0xf]
        %v1371 = vperm.slane %v437, 0
        %v1376 = vunpack.c.l.b16 %v1367
        %v1377 = vunpack.c.l.b16 %v1368
        %v1378 = vunpack.c.l.b16 %v1369
        %v1379 = vunpack.c.l.b16 %v1370
        %v1380 = vpack.c.b16 %v1377, %v1376
        %v1381 = vpack.c.b16 %v1379, %v1378
        %v1385 = vsel %vm603, %v1359, 0
        %v1388 = vsel %vm603, %v1360, 0
        %v1391 = vsel %vm603, %v1361, 0
        %v1394 = vsel %vm603, %v1362, 0
        %v1397 = vsel %vm603, %v1363, 0
        %v1400 = vsel %vm603, %v1364, 0
        %v1403 = vsel %vm603, %v1365, 0
        %v1406 = vsel %vm603, %v1366, 0
        %1408 = vmatpush.bf16.msra.mxu0 0
        %1409 = vmatpush.bf16.msra.mxu0 0
        %1410 = vmatpush.bf16.msra.mxu0 0
        %1411 = vmatpush.bf16.msra.mxu0 0
        %1412 = vmatpush.bf16.msra.mxu0 0
        %1413 = vmatpush.bf16.msra.mxu0 0
        %1414 = vmatpush.bf16.msra.mxu0 %v1381
        %1415 = vmatpush.bf16.msra.mxu0 %v1380
        %1416 = vmatmul.bf16.gmra.mxu0 %v1385
        %v1417 = vpop.f32.mrf.mxu0
        %v1418 = vadd.f32 %v1371, %v1417
        %v1419 = vpop.f32.mrf.mxu0
        %v1420 = vadd.f32 %v1371, %v1419
        %1421 = vmatmul.bf16.gmra.mxu0 %v1388
        %v1422 = vpop.f32.mrf.mxu0
        %v1423 = vadd.f32 %v1371, %v1422
        %v1424 = vpop.f32.mrf.mxu0
        %v1425 = vadd.f32 %v1371, %v1424
        %1426 = vmatmul.bf16.gmra.mxu0 %v1391
        %v1427 = vpop.f32.mrf.mxu0
        %v1428 = vadd.f32 %v1371, %v1427
        %v1429 = vpop.f32.mrf.mxu0
        %v1430 = vadd.f32 %v1371, %v1429
        %1431 = vmatmul.bf16.gmra.mxu0 %v1394
        %v1432 = vpop.f32.mrf.mxu0
        %v1433 = vadd.f32 %v1371, %v1432
        %v1434 = vpop.f32.mrf.mxu0
        %v1435 = vadd.f32 %v1371, %v1434
        %1436 = vmatmul.bf16.gmra.mxu0 %v1397
        %v1437 = vpop.f32.mrf.mxu0
        %v1438 = vadd.f32 %v1371, %v1437
        %v1439 = vpop.f32.mrf.mxu0
        %v1440 = vadd.f32 %v1371, %v1439
        %1441 = vmatmul.bf16.gmra.mxu0 %v1400
        %v1442 = vpop.f32.mrf.mxu0
        %v1443 = vadd.f32 %v1371, %v1442
        %v1444 = vpop.f32.mrf.mxu0
        %v1445 = vadd.f32 %v1371, %v1444
        %1446 = vmatmul.bf16.gmra.mxu0 %v1403
        %v1447 = vpop.f32.mrf.mxu0
        %v1448 = vadd.f32 %v1371, %v1447
        %v1449 = vpop.f32.mrf.mxu0
        %v1450 = vadd.f32 %v1371, %v1449
        %1451 = vmatmul.bf16.gmra.mxu0 %v1406
        %v1452 = vpop.f32.mrf.mxu0
        %v1453 = vadd.f32 %v1371, %v1452
        %v1454 = vpop.f32.mrf.mxu0
        %v1455 = vadd.f32 %v1371, %v1454
        %1456 = vdwg.mxu0
        %v1457 = vmax.f32 %v1418, 0.0
        %v1458 = vmax.f32 %v1420, 0.0
        %v1459 = vmax.f32 %v1423, 0.0
        %v1460 = vmax.f32 %v1425, 0.0
        %v1461 = vmax.f32 %v1428, 0.0
        %v1462 = vmax.f32 %v1430, 0.0
        %v1463 = vmax.f32 %v1433, 0.0
        %v1464 = vmax.f32 %v1435, 0.0
        %v1465 = vmax.f32 %v1438, 0.0
        %v1466 = vmax.f32 %v1440, 0.0
        %v1467 = vmax.f32 %v1443, 0.0
        %v1468 = vmax.f32 %v1445, 0.0
        %v1469 = vmax.f32 %v1448, 0.0
        %v1470 = vmax.f32 %v1450, 0.0
        %v1471 = vmax.f32 %v1453, 0.0
        %v1472 = vmax.f32 %v1455, 0.0
        %v1473 = vpack.c.bf16 %v1458, %v1457
        %v1474 = vpack.c.bf16 %v1460, %v1459
        %v1475 = vpack.c.bf16 %v1462, %v1461
        %v1476 = vpack.c.bf16 %v1464, %v1463
        %v1477 = vpack.c.bf16 %v1466, %v1465
        %v1478 = vpack.c.bf16 %v1468, %v1467
        %v1479 = vpack.c.bf16 %v1470, %v1469
        %v1480 = vpack.c.bf16 %v1472, %v1471
        %v1481 = vld [vmem:[%s8] sm:$0xf]
        %v1482 = vld [vmem:[%s8 + $0x4] sm:$0xf]
        %v1483 = vld [vmem:[%s8 + $0x8] sm:$0xf]
        %v1484 = vld [vmem:[%s8 + $0xc] sm:$0xf]
        %v1485 = vperm.slane %v438, 0
        %v1490 = vunpack.c.l.b16 %v1481
        %v1491 = vunpack.c.l.b16 %v1482
        %v1492 = vunpack.c.l.b16 %v1483
        %v1493 = vunpack.c.l.b16 %v1484
        %v1494 = vpack.c.b16 %v1491, %v1490
        %v1495 = vpack.c.b16 %v1493, %v1492
        %v1499 = vsel %vm603, %v1473, 0
        %v1502 = vsel %vm603, %v1474, 0
        %v1505 = vsel %vm603, %v1475, 0
        %v1508 = vsel %vm603, %v1476, 0
        %v1511 = vsel %vm603, %v1477, 0
        %v1514 = vsel %vm603, %v1478, 0
        %v1517 = vsel %vm603, %v1479, 0
        %v1520 = vsel %vm603, %v1480, 0
        %1522 = vmatpush.bf16.msra.mxu0 0
        %1523 = vmatpush.bf16.msra.mxu0 0
        %1524 = vmatpush.bf16.msra.mxu0 0
        %1525 = vmatpush.bf16.msra.mxu0 0
        %1526 = vmatpush.bf16.msra.mxu0 0
        %1527 = vmatpush.bf16.msra.mxu0 0
        %1528 = vmatpush.bf16.msra.mxu0 %v1495
        %1529 = vmatpush.bf16.msra.mxu0 %v1494
        %1530 = vmatmul.bf16.gmra.mxu0 %v1499
        %v1531 = vpop.f32.mrf.mxu0
        %v1532 = vadd.f32 %v1485, %v1531
        %v1533 = vpop.f32.mrf.mxu0
        %v1534 = vadd.f32 %v1485, %v1533
        %1535 = vmatmul.bf16.gmra.mxu0 %v1502
        %v1536 = vpop.f32.mrf.mxu0
        %v1537 = vadd.f32 %v1485, %v1536
        %v1538 = vpop.f32.mrf.mxu0
        %v1539 = vadd.f32 %v1485, %v1538
        %1540 = vmatmul.bf16.gmra.mxu0 %v1505
        %v1541 = vpop.f32.mrf.mxu0
        %v1542 = vadd.f32 %v1485, %v1541
        %v1543 = vpop.f32.mrf.mxu0
        %v1544 = vadd.f32 %v1485, %v1543
        %1545 = vmatmul.bf16.gmra.mxu0 %v1508
        %v1546 = vpop.f32.mrf.mxu0
        %v1547 = vadd.f32 %v1485, %v1546
        %v1548 = vpop.f32.mrf.mxu0
        %v1549 = vadd.f32 %v1485, %v1548
        %1550 = vmatmul.bf16.gmra.mxu0 %v1511
        %v1551 = vpop.f32.mrf.mxu0
        %v1552 = vadd.f32 %v1485, %v1551
        %v1553 = vpop.f32.mrf.mxu0
        %v1554 = vadd.f32 %v1485, %v1553
        %1555 = vmatmul.bf16.gmra.mxu0 %v1514
        %v1556 = vpop.f32.mrf.mxu0
        %v1557 = vadd.f32 %v1485, %v1556
        %v1558 = vpop.f32.mrf.mxu0
        %v1559 = vadd.f32 %v1485, %v1558
        %1560 = vmatmul.bf16.gmra.mxu0 %v1517
        %v1561 = vpop.f32.mrf.mxu0
        %v1562 = vadd.f32 %v1485, %v1561
        %v1563 = vpop.f32.mrf.mxu0
        %v1564 = vadd.f32 %v1485, %v1563
        %1565 = vmatmul.bf16.gmra.mxu0 %v1520
        %v1566 = vpop.f32.mrf.mxu0
        %v1567 = vadd.f32 %v1485, %v1566
        %v1568 = vpop.f32.mrf.mxu0
        %v1569 = vadd.f32 %v1485, %v1568
        %1570 = vdwg.mxu0
        %v1571 = vmax.f32 %v1532, 0.0
        %v1572 = vmax.f32 %v1534, 0.0
        %v1573 = vmax.f32 %v1537, 0.0
        %v1574 = vmax.f32 %v1539, 0.0
        %v1575 = vmax.f32 %v1542, 0.0
        %v1576 = vmax.f32 %v1544, 0.0
        %v1577 = vmax.f32 %v1547, 0.0
        %v1578 = vmax.f32 %v1549, 0.0
        %v1579 = vmax.f32 %v1552, 0.0
        %v1580 = vmax.f32 %v1554, 0.0
        %v1581 = vmax.f32 %v1557, 0.0
        %v1582 = vmax.f32 %v1559, 0.0
        %v1583 = vmax.f32 %v1562, 0.0
        %v1584 = vmax.f32 %v1564, 0.0
        %v1585 = vmax.f32 %v1567, 0.0
        %v1586 = vmax.f32 %v1569, 0.0
        %v1587 = vld [vmem:[%s9] sm:$0xf]
        %v1588 = vpack.c.bf16 %v1572, %v1571
        %v1589 = vpack.c.bf16 %v1574, %v1573
        %v1590 = vpack.c.bf16 %v1576, %v1575
        %v1591 = vpack.c.bf16 %v1578, %v1577
        %v1592 = vpack.c.bf16 %v1580, %v1579
        %v1593 = vpack.c.bf16 %v1582, %v1581
        %v1594 = vpack.c.bf16 %v1584, %v1583
        %v1595 = vpack.c.bf16 %v1586, %v1585
        %v1597 = vsel %vm603, %v1587, 0
        %v1600 = vsel %vm603, %v1588, 0
        %v1603 = vsel %vm603, %v1589, 0
        %v1606 = vsel %vm603, %v1590, 0
        %v1609 = vsel %vm603, %v1591, 0
        %v1612 = vsel %vm603, %v1592, 0
        %v1615 = vsel %vm603, %v1593, 0
        %v1618 = vsel %vm603, %v1594, 0
        %v1621 = vsel %vm603, %v1595, 0
        %1623 = vmatpush.bf16.xpose.msra.mxu0 %v1621
        %1624 = vmatpush.bf16.xpose.msra.mxu0 %v1618
        %1625 = vmatpush.bf16.xpose.msra.mxu0 %v1615
        %1626 = vmatpush.bf16.xpose.msra.mxu0 %v1612
        %1627 = vmatpush.bf16.xpose.msra.mxu0 %v1609
        %1628 = vmatpush.bf16.xpose.msra.mxu0 %v1606
        %1629 = vmatpush.bf16.xpose.msra.mxu0 %v1603
        %1630 = vmatpush.bf16.xpose.msra.mxu0 %v1600
        %1631 = vmatmul.bf16.gmra.mxu0 %v1597
        %v1632 = vpop.f32.mrf.mxu0
        %v1633 = vadd.f32 0.0, %v1632
        %v1634 = vpop.f32.mrf.mxu0
        %1635 = vdwg.mxu0
        %v1636 = vld [vmem:[#allocation2] sm:$0x1]
        %1638 = vset.pattern.permute.xlu0 0
        %1639 = vperm.xlu0 %1638, %v1636
        %v1640 = vpop.permute.xlu0 %1639
        %v1642 = vperm.slane %v1640, 0
        %v1643 = vadd.f32 %v1633, %v1642
        %v1644 = vsub.f32 0.0, %v1643
        %v1645 = vmul.f32 %v1644, 1.442695
        %v1646 = vpow.pop %v1645
        %v1647 = vadd.f32 %v1646, 1.0
        %v1648 = vrcp.pop %v1647
        %v1649 = vmul.f32 %v1647, %v1648
        %v1650 = vsub.f32 1.0, %v1649
        %v1651 = vmul.f32 %v1648, %v1650
        %v1652 = vadd.f32 %v1648, %v1651
        %vm1653 = vweird.f32 %v1647
        %vm1654 = vweird.f32 %v1648
        %vm1655 = vmor %vm1653, %vm1654
        %v1656 = vsel %vm1655, %v1648, %v1652
        %v1657 = vand.u32 2147483647, %v1647
        %vm1658 = vcmp.eq.f32.partialorder %v1657, 8.507059e+37
        %v1659 = vand.u32 %v1647, 2147483648
        %v1660 = vor.u32 1.1754944e-38, %v1659
        %v1661 = vsel %vm1658, %v1660, %v1656
        %v1662 = vmul.f32 1.0, %v1661
        %v1663 = vmul.f32 %v1662, 3.0
        %1664 = vst [vmem:[%s408] sm:$0x1] %v1663
        %s1665 = sand.u32 %s293, 1
        %s1666 = scalar_lea.sflag [#allocation4], %s1665
        %s1667 = sand.u32 %s293, 1
        %s1668 = scalar_lea.vmem [#allocation3], %s1667
        // Predicated region
        $region69: #{deepsdf_forward.1} parent=67 // pred_check
          %p1669 = pneg %p303
        $region70: #{deepsdf_forward.1} parent=67 // pred_check_branch
          %1671 = sbr.rel (%p1669) target = $region72
        $region71: #{deepsdf_forward.1} parent=67 // pred_region
          %1673 = vsyncadd %s1666, 0
          %s1674 = scalar_lea.hbm %s12, %s28
          %s1676 = sshll.u32 %s1668, 4
          %s1677 = int_to_ptr.vmem [resolvable:$true] %s1676
          %s1678 = sshll.u32 %s1674, 4
          %s1679 = int_to_ptr.hbm [resolvable:$true] %s1678
          %1681 = dma.vmem_to_hbm [thread:$0]  %s1677, 16, %s1679, %s1666
        $region72: #{deepsdf_forward.1} parent=67 // pred_fallthru
          _
      $region68: #{deepsdf_forward.1} parent=5 // pred_fallthru
        _
      %p1682 = scmp.le.s32.totalorder 2, %s23
      // Predicated region
      $region73: #{deepsdf_forward.1} parent=5 // pred_check
        %p1683 = pneg %p1682
      $region74: #{deepsdf_forward.1} parent=5 // pred_check_branch
        %1685 = sbr.rel (%p1683) target = $region76
      $region75: #{deepsdf_forward.1} parent=5 // pred_region
        %s1686 = ssub.s32 %s23, 2
        // Predicated region
        $region77: #{deepsdf_forward.1} parent=75 // pred_check
          %p1687 = pneg %p309
        $region78: #{deepsdf_forward.1} parent=75 // pred_check_branch
          %1689 = sbr.rel (%p1687) target = $region80
        $region79: #{deepsdf_forward.1} parent=75 // pred_region
          %s1690 = sand.u32 %s294, 1
          %s1691 = scalar_lea.sflag [#allocation4], %s1690
          %s1692 = sand.u32 %s294, 1
          %s1693 = scalar_lea.vmem [#allocation3], %s1692
          %1695 = dma.done %s1691, 16
        $region80: #{deepsdf_forward.1} parent=75 // pred_fallthru
          _
      $region76: #{deepsdf_forward.1} parent=5 // pred_fallthru
        _
    $region6: #{deepsdf_forward.1} parent=1 // loop_footer
      %s27 = sadd.s32 1, %s23
    $region7: #{deepsdf_forward.1} parent=1 // loop_footer_branch
      %22 = sbr.rel target = $region3
    $region8: #{deepsdf_forward.1} parent=1 // loop_exit
      _
    %1696 = vsyncpa [#allocation4], 1
    %s1697 = scalar_lea.sflag [#allocation4], 1
    %1698 = vsyncpa %s1697, 1

</llo_original>
